<compile_context>
chip_gen: v7x
topology: tpu7x:2x2x1
jax: 0.10.0
libtpu: 0.0.40
codegen_flags: <defaults>
</compile_context>

<pallas_src>
import functools
import math

import jax
import jax.numpy as jnp
from jax import lax
from jax.experimental import pallas as pl
from jax.experimental.pallas import tpu as pltpu


def _round_up(v, m):
    return -(-v // m) * m


def _invariant_spec(block_shape, index_map):
    """BlockSpec for a grid-invariant operand, single-buffered when supported."""
    try:
        return pl.BlockSpec(block_shape, index_map, pipeline_mode=pl.Buffered(1))
    except (TypeError, AttributeError):
        # Older jax: no pipeline_mode / Buffered -> default double buffering.
        return pl.BlockSpec(block_shape, index_map)


def _gcn_kernel(x_ref, a_ref, w_ref, b_ref, o_ref, xk_ref, h_ref, *,
                support_len, order, c_in, c_out, nb, seq_len, vp):
    """Fused GCN forward for one block of `nb` batch elements.

    x_ref : (nb*L*C, Vp)       rows (n, l, c), lanes = node v (zero padded)
    a_ref : (S, Vp, Vp)        zero-padded adjacencies
    w_ref : (c_out, T*C)       1x1-conv weight, column = t*C + c (t = concat term)
    b_ref : (c_out, 1) f32     1x1-conv bias
    o_ref : (c_out, nb*L*Vp)   rows = output channel, lanes = (n, l, v)
    xk_ref: (nb*L*C, Vp)       scratch: current diffusion hop (compute dtype)
    h_ref : (T*C, nb*L*Vp)     scratch: all concat terms in conv-ready layout
    """
    C, L, Vp = c_in, seq_len, vp
    NL = nb * L

    def copy_term_to_h(src_ref, row0):
        # Re-layout one concat term: (C, Vp) row-block j of src (rows (n,l,c), lanes v)
        # -> H rows [row0, row0+C) at lane offset j*Vp, j = n*L + l.
        # Contiguous row reads + 128-aligned lane stores; no strided sublane access.
        def emit(j):
            if isinstance(j, int):
                row, lane = j * C, j * Vp
            else:
                row = pl.multiple_of(j * C, C)
                lane = pl.multiple_of(j * Vp, Vp)
            h_ref[row0:row0 + C, pl.ds(lane, Vp)] = src_ref[pl.ds(row, C), :]

        if NL <= 32:                 # short trip count: static unroll
            for j in range(NL):
                emit(j)
        else:                        # long trip count: bounded-size loop
            def body(j, carry):
                emit(j)
                return carry
            lax.fori_loop(0, NL, body, 0, unroll=8)

    # ---- concat term t = 0: the identity term ----
    # TODO(synk): folding this term directly into the conv (extra small matmul) would
    # avoid the copy; it is 1/T of H traffic so the simple copy is kept.
    copy_term_to_h(x_ref, 0)

    # ---- graph diffusion (nconv): one fat matmul per hop, contracting nodes only ----
    t = 1
    for s in range(support_len):
        a_s = a_ref[s]                                        # (Vp, Vp)
        for k in range(order):
            src = x_ref if k == 0 else xk_ref                 # hops restart from x per support
            nxt = jnp.dot(src[...], a_s, preferred_element_type=jnp.float32)
            xk_ref[...] = nxt.astype(xk_ref.dtype)
            copy_term_to_h(xk_ref, t * C)
            t += 1

    # ---- 1x1 conv over all T*C concat channels: ONE lane-dense matmul per step ----
    # (dropout is identity in eval mode; bias broadcast happens exactly once.)
    y = jnp.dot(w_ref[...], h_ref[...], preferred_element_type=jnp.float32)
    o_ref[...] = (y + b_ref[...]).astype(o_ref.dtype)


def _estimate_vmem_bytes(nb, *, C, L, Vp, S, TC, c_out, cdt, odt,
                         single_buffered_invariants=True):
    cd = jnp.dtype(cdt).itemsize
    od = jnp.dtype(odt).itemsize
    NL = nb * L
    inv = 1 if single_buffered_invariants else 2
    x_blk = _round_up(NL * C, 8) * Vp * cd * 2                 # double-buffered input
    o_blk = _round_up(c_out, 8) * NL * Vp * od * 2             # double-buffered output
    a_blk = S * Vp * Vp * cd * inv
    w_blk = _round_up(c_out, 8) * _round_up(TC, 128) * cd * inv
    b_blk = _round_up(c_out, 8) * 128 * 4 * inv
    xk_scr = _round_up(NL * C, 8) * Vp * cd
    h_scr = _round_up(TC, 8) * NL * Vp * cd
    return x_blk + o_blk + a_blk + w_blk + b_blk + xk_scr + h_scr


def gcn_forward(x, supports, weight, bias, *, order=2, batch_block=None,
                compute_dtype=jnp.float32, out_dtype=None, lane_multiple=128,
                vmem_budget_bytes=40 * 1024 * 1024):
    """Fused GCN forward pass.

    x        : (N, C, V, L) float32
    supports : (S, V, V)    float32 (shared 2-D adjacencies)
    weight   : (c_out, (order*S + 1) * C)  squeezed 1x1-conv weight
    bias     : (c_out,)
    returns  : (N, c_out, V, L) in `out_dtype` (default: x.dtype)
    """
    # TODO(synk): the PyTorch nconv also supports per-batch 3-D adjacency (N, V, W);
    #             only the shared 2-D adjacency path is implemented.
    # TODO(synk): F.dropout with training=True (random mask) is not implemented; this
    #             matches eval mode only.
    # TODO(synk): for very small graphs (V << 128) the lane padding wastes diffusion
    #             FLOPs; a sublane-V layout would be better but is not implemented.
    N, C, V, L = x.shape
    S = supports.shape[0]
    c_out, c_tot = weight.shape
    T = order * S + 1
    assert c_tot == T * C, (c_tot, T, C)
    out_dtype = x.dtype if out_dtype is None else out_dtype
    Vp = _round_up(V, lane_multiple)
    TC = T * C

    def _fits(nb):
        if N % nb:
            return False
        if N >= 2 and N // nb < 2:        # keep >= 2 grid steps (v7x: two TensorCores)
            return False
        if nb != N and (nb * L * C) % 8:  # BlockSpec sublane divisibility
            return False
        est = _estimate_vmem_bytes(nb, C=C, L=L, Vp=Vp, S=S, TC=TC, c_out=c_out,
                                   cdt=compute_dtype, odt=out_dtype)
        return est <= vmem_budget_bytes

    if batch_block is None:
        nb = 1
        for cand in range(1, min(N, 16) + 1):
            if _fits(cand):
                nb = cand
    else:
        nb = batch_block
        assert N % nb == 0, (N, nb)
        assert nb == N or (nb * L * C) % 8 == 0, (nb, L, C)

    NL = nb * L
    est = _estimate_vmem_bytes(nb, C=C, L=L, Vp=Vp, S=S, TC=TC, c_out=c_out,
                               cdt=compute_dtype, odt=out_dtype)
    vmem_limit = int(min(max(est * 3 // 2 + (2 << 20), 32 << 20), 100 << 20))

    # ---- layout plumbing (plain JAX glue) ----
    # x: (N, C, V, L) -> rows (n, l, c), lanes v, zero-padded to Vp.
    x_rows = jnp.transpose(x, (0, 3, 1, 2)).reshape(N * L * C, V)
    x_rows = jnp.pad(x_rows, ((0, 0), (0, Vp - V))).astype(compute_dtype)
    # Adjacencies zero-padded: padded node lanes stay exactly zero through every hop.
    a_pad = jnp.pad(supports, ((0, 0), (0, Vp - V), (0, Vp - V))).astype(compute_dtype)
    w_p = weight.astype(compute_dtype)                 # (c_out, T*C), column = t*C + c
    b_p = bias.reshape(c_out, 1).astype(jnp.float32)

    cost = pl.CostEstimate(
        flops=2 * N * L * C * Vp * Vp * S * order + 2 * N * L * Vp * c_out * TC,
        transcendentals=0,
        bytes_accessed=(x_rows.size * x_rows.dtype.itemsize
                        + a_pad.size * a_pad.dtype.itemsize
                        + w_p.size * w_p.dtype.itemsize
                        + b_p.size * b_p.dtype.itemsize
                        + c_out * N * L * Vp * jnp.dtype(out_dtype).itemsize),
    )

    kernel = functools.partial(_gcn_kernel, support_len=S, order=order, c_in=C,
                               c_out=c_out, nb=nb, seq_len=L, vp=Vp)

    out_flat = pl.pallas_call(
        kernel,
        out_shape=jax.ShapeDtypeStruct((c_out, N * L * Vp), out_dtype),
        grid_spec=pltpu.PrefetchScalarGridSpec(
            num_scalar_prefetch=0,
            grid=(N // nb,),
            in_specs=[
                pl.BlockSpec((NL * C, Vp), lambda i: (i, 0)),
                # Grid-invariant operands: constant index maps, single-buffered.
                _invariant_spec((S, Vp, Vp), lambda i: (0, 0, 0)),
                _invariant_spec((c_out, TC), lambda i: (0, 0)),
                _invariant_spec((c_out, 1), lambda i: (0, 0)),
            ],
            out_specs=pl.BlockSpec((c_out, NL * Vp), lambda i: (0, i)),
            scratch_shapes=[
                pltpu.VMEM((NL * C, Vp), compute_dtype),       # current diffusion hop
                pltpu.VMEM((TC, NL * Vp), compute_dtype),      # concat terms, conv-ready
            ],
        ),
        compiler_params=pltpu.CompilerParams(
            dimension_semantics=("parallel",),
            vmem_limit_bytes=vmem_limit,
        ),
        cost_estimate=cost,
    )(x_rows, a_pad, w_p, b_p)

    # rows = output channel, lanes = (n, l, v)  ->  (N, c_out, V, L)
    out = out_flat.reshape(c_out, N, L, Vp)[:, :, :, :V]
    return jnp.transpose(out, (1, 0, 3, 2))


def gcn_reference(x, supports, weight, bias, *, order=2):
    """Plain-JAX reference matching the PyTorch forward (eval mode)."""
    out = [x]
    for s in range(supports.shape[0]):
        a = supports[s]
        x1 = jnp.einsum("ncvl,vw->ncwl", x, a)
        out.append(x1)
        for _ in range(2, order + 1):
            x2 = jnp.einsum("ncvl,vw->ncwl", x1, a)
            out.append(x2)
            x1 = x2
    h = jnp.concatenate(out, axis=1)
    y = jnp.einsum("oc,ncvl->novl", weight, h) + bias[None, :, None, None]
    return y


if __name__ == "__main__":
    # Small shapes consistent with the module: batch=2, c_in=4, nodes=16, time=8,
    # support_len=3, order=2  -> concat channels = (2*3+1)*4 = 28, c_out=32.
    N, C_IN, V, L = 2, 4, 16, 8
    SUPPORT_LEN, ORDER = 3, 2
    C_OUT = 32
    C_TOT = (ORDER * SUPPORT_LEN + 1) * C_IN

    key = jax.random.PRNGKey(0)
    kx, ka, kw, kb = jax.random.split(key, 4)

    x = jax.random.normal(kx, (N, C_IN, V, L), dtype=jnp.float32)

    # Deterministic "adjacency" supports: random nonnegative, row-normalized.
    a_raw = jax.random.uniform(ka, (SUPPORT_LEN, V, V), dtype=jnp.float32)
    supports = a_raw / jnp.sum(a_raw, axis=-1, keepdims=True)

    # Conv2d(C_TOT -> C_OUT, kernel_size=(1,1)) parameters.
    bound = 1.0 / math.sqrt(C_TOT)
    weight = jax.random.uniform(kw, (C_OUT, C_TOT), dtype=jnp.float32,
                                minval=-bound, maxval=bound)
    bias = jax.random.uniform(kb, (C_OUT,), dtype=jnp.float32,
                              minval=-bound, maxval=bound)

    ref = gcn_reference(x, supports, weight, bias, order=ORDER)

    # f32 path: numerically equivalent to the reference.
    out_f32 = gcn_forward(x, supports, weight, bias, order=ORDER,
                          compute_dtype=jnp.float32)
    out_f32 = jax.block_until_ready(out_f32)
    assert out_f32.shape == (N, C_OUT, V, L), out_f32.shape
    assert jnp.allclose(out_f32, ref, atol=1e-4, rtol=1e-4), \
        float(jnp.max(jnp.abs(out_f32 - ref)))

    # bf16 MXU path with bf16 output (f32 accumulation): looser tolerance.
    out_bf16 = gcn_forward(x, supports, weight, bias, order=ORDER,
                           compute_dtype=jnp.bfloat16, out_dtype=jnp.bfloat16)
    out_bf16 = jax.block_until_ready(out_bf16)
    assert out_bf16.shape == (N, C_OUT, V, L), out_bf16.shape
    assert jnp.allclose(out_bf16.astype(jnp.float32), ref, atol=7e-2, rtol=7e-2), \
        float(jnp.max(jnp.abs(out_bf16.astype(jnp.float32) - ref)))

    print("KERNEL_OK")
</pallas_src>

<mosaic_0001>
module attributes {stable_mosaic.version = 11 : i64} {
  func.func @_gcn_kernel(%arg0: i32, %arg1: memref<32x128xf32, #tpu.memory_space<vmem>>, %arg2: memref<3x128x128xf32, #tpu.memory_space<vmem>>, %arg3: memref<32x28xf32, #tpu.memory_space<vmem>>, %arg4: memref<32x1xf32, #tpu.memory_space<vmem>>, %arg5: memref<32x1024xf32, #tpu.memory_space<vmem>>, %arg6: memref<32x128xf32, #tpu.memory_space<vmem>>, %arg7: memref<28x1024xf32, #tpu.memory_space<vmem>>) attributes {dimension_semantics = [#tpu.dimension_semantics<parallel>], iteration_bounds = array<i64: 2>, scalar_prefetch = 0 : i64, scratch_operands = 2 : i64, tpu.core_type = #tpu.core_type<tc>, window_params = [{transform_indices = @transform_0, window_bounds = array<i64: 32, 128>}, {pipeline_mode = #tpu.pipeline_mode<synchronous>, transform_indices = @transform_1, window_bounds = array<i64: 3, 128, 128>}, {pipeline_mode = #tpu.pipeline_mode<synchronous>, transform_indices = @transform_2, window_bounds = array<i64: 32, 28>}, {pipeline_mode = #tpu.pipeline_mode<synchronous>, transform_indices = @transform_3, window_bounds = array<i64: 32, 1>}, {transform_indices = @transform_4, window_bounds = array<i64: 32, 1024>}]} {
    %c0 = arith.constant 0 : index
    %c0_0 = arith.constant 0 : index
    %0 = vector.load %arg1[%c0, %c0_0] : memref<32x128xf32, #tpu.memory_space<vmem>>, vector<4x128xf32>
    %c0_1 = arith.constant 0 : index
    %c0_2 = arith.constant 0 : index
    %1 = vector.load %arg7[%c0_1, %c0_2] : memref<28x1024xf32, #tpu.memory_space<vmem>>, vector<4x128xf32>
    tpu.vector_store %arg7[%c0_1, %c0_2], %0 {strides = array<i32>} : memref<28x1024xf32, #tpu.memory_space<vmem>>, vector<4x128xf32>,
    %c4 = arith.constant 4 : index
    %c0_3 = arith.constant 0 : index
    %2 = vector.load %arg1[%c4, %c0_3] : memref<32x128xf32, #tpu.memory_space<vmem>>, vector<4x128xf32>
    %c0_4 = arith.constant 0 : index
    %c128 = arith.constant 128 : index
    %3 = vector.load %arg7[%c0_4, %c128] : memref<28x1024xf32, #tpu.memory_space<vmem>>, vector<4x128xf32>
    tpu.vector_store %arg7[%c0_4, %c128], %2 {strides = array<i32>} : memref<28x1024xf32, #tpu.memory_space<vmem>>, vector<4x128xf32>,
    %c8 = arith.constant 8 : index
    %c0_5 = arith.constant 0 : index
    %4 = vector.load %arg1[%c8, %c0_5] : memref<32x128xf32, #tpu.memory_space<vmem>>, vector<4x128xf32>
    %c0_6 = arith.constant 0 : index
    %c256 = arith.constant 256 : index
    %5 = vector.load %arg7[%c0_6, %c256] : memref<28x1024xf32, #tpu.memory_space<vmem>>, vector<4x128xf32>
    tpu.vector_store %arg7[%c0_6, %c256], %4 {strides = array<i32>} : memref<28x1024xf32, #tpu.memory_space<vmem>>, vector<4x128xf32>,
    %c12 = arith.constant 12 : index
    %c0_7 = arith.constant 0 : index
    %6 = vector.load %arg1[%c12, %c0_7] : memref<32x128xf32, #tpu.memory_space<vmem>>, vector<4x128xf32>
    %c0_8 = arith.constant 0 : index
    %c384 = arith.constant 384 : index
    %7 = vector.load %arg7[%c0_8, %c384] : memref<28x1024xf32, #tpu.memory_space<vmem>>, vector<4x128xf32>
    tpu.vector_store %arg7[%c0_8, %c384], %6 {strides = array<i32>} : memref<28x1024xf32, #tpu.memory_space<vmem>>, vector<4x128xf32>,
    %c16 = arith.constant 16 : index
    %c0_9 = arith.constant 0 : index
    %8 = vector.load %arg1[%c16, %c0_9] : memref<32x128xf32, #tpu.memory_space<vmem>>, vector<4x128xf32>
    %c0_10 = arith.constant 0 : index
    %c512 = arith.constant 512 : index
    %9 = vector.load %arg7[%c0_10, %c512] : memref<28x1024xf32, #tpu.memory_space<vmem>>, vector<4x128xf32>
    tpu.vector_store %arg7[%c0_10, %c512], %8 {strides = array<i32>} : memref<28x1024xf32, #tpu.memory_space<vmem>>, vector<4x128xf32>,
    %c20 = arith.constant 20 : index
    %c0_11 = arith.constant 0 : index
    %10 = vector.load %arg1[%c20, %c0_11] : memref<32x128xf32, #tpu.memory_space<vmem>>, vector<4x128xf32>
    %c0_12 = arith.constant 0 : index
    %c640 = arith.constant 640 : index
    %11 = vector.load %arg7[%c0_12, %c640] : memref<28x1024xf32, #tpu.memory_space<vmem>>, vector<4x128xf32>
    tpu.vector_store %arg7[%c0_12, %c640], %10 {strides = array<i32>} : memref<28x1024xf32, #tpu.memory_space<vmem>>, vector<4x128xf32>,
    %c24 = arith.constant 24 : index
    %c0_13 = arith.constant 0 : index
    %12 = vector.load %arg1[%c24, %c0_13] : memref<32x128xf32, #tpu.memory_space<vmem>>, vector<4x128xf32>
    %c0_14 = arith.constant 0 : index
    %c768 = arith.constant 768 : index
    %13 = vector.load %arg7[%c0_14, %c768] : memref<28x1024xf32, #tpu.memory_space<vmem>>, vector<4x128xf32>
    tpu.vector_store %arg7[%c0_14, %c768], %12 {strides = array<i32>} : memref<28x1024xf32, #tpu.memory_space<vmem>>, vector<4x128xf32>,
    %c28 = arith.constant 28 : index
    %c0_15 = arith.constant 0 : index
    %14 = vector.load %arg1[%c28, %c0_15] : memref<32x128xf32, #tpu.memory_space<vmem>>, vector<4x128xf32>
    %c0_16 = arith.constant 0 : index
    %c896 = arith.constant 896 : index
    %15 = vector.load %arg7[%c0_16, %c896] : memref<28x1024xf32, #tpu.memory_space<vmem>>, vector<4x128xf32>
    tpu.vector_store %arg7[%c0_16, %c896], %14 {strides = array<i32>} : memref<28x1024xf32, #tpu.memory_space<vmem>>, vector<4x128xf32>,
    %c0_17 = arith.constant 0 : index
    %c0_18 = arith.constant 0 : index
    %c0_19 = arith.constant 0 : index
    %16 = vector.load %arg2[%c0_17, %c0_18, %c0_19] : memref<3x128x128xf32, #tpu.memory_space<vmem>>, vector<1x128x128xf32>
    %17 = vector.shape_cast %16 : vector<1x128x128xf32> to vector<128x128xf32>
    %c0_20 = arith.constant 0 : index
    %c0_21 = arith.constant 0 : index
    %18 = vector.load %arg1[%c0_20, %c0_21] : memref<32x128xf32, #tpu.memory_space<vmem>>, vector<32x128xf32>
    %cst = arith.constant dense<0.000000e+00> : vector<32x128xf32>
    %19 = tpu.matmul %18, %17, %cst {dimension_numbers = #tpu.dot_dimension_numbers<[1], [0], [0], [1], [0, 0, 1, 1], [], []>} : vector<32x128xf32>, vector<128x128xf32>, vector<32x128xf32> -> vector<32x128xf32>
    %c0_22 = arith.constant 0 : index
    %c0_23 = arith.constant 0 : index
    %20 = vector.load %arg6[%c0_22, %c0_23] : memref<32x128xf32, #tpu.memory_space<vmem>>, vector<32x128xf32>
    tpu.vector_store %arg6[%c0_22, %c0_23], %19 {strides = array<i32>} : memref<32x128xf32, #tpu.memory_space<vmem>>, vector<32x128xf32>,
    %c0_24 = arith.constant 0 : index
    %c0_25 = arith.constant 0 : index
    %21 = vector.load %arg6[%c0_24, %c0_25] : memref<32x128xf32, #tpu.memory_space<vmem>>, vector<4x128xf32>
    %c4_26 = arith.constant 4 : index
    %c0_27 = arith.constant 0 : index
    %22 = vector.load %arg7[%c4_26, %c0_27] : memref<28x1024xf32, #tpu.memory_space<vmem>>, vector<4x128xf32>
    tpu.vector_store %arg7[%c4_26, %c0_27], %21 {strides = array<i32>} : memref<28x1024xf32, #tpu.memory_space<vmem>>, vector<4x128xf32>,
    %c4_28 = arith.constant 4 : index
    %c0_29 = arith.constant 0 : index
    %23 = vector.load %arg6[%c4_28, %c0_29] : memref<32x128xf32, #tpu.memory_space<vmem>>, vector<4x128xf32>
    %c4_30 = arith.constant 4 : index
    %c128_31 = arith.constant 128 : index
    %24 = vector.load %arg7[%c4_30, %c128_31] : memref<28x1024xf32, #tpu.memory_space<vmem>>, vector<4x128xf32>
    tpu.vector_store %arg7[%c4_30, %c128_31], %23 {strides = array<i32>} : memref<28x1024xf32, #tpu.memory_space<vmem>>, vector<4x128xf32>,
    %c8_32 = arith.constant 8 : index
    %c0_33 = arith.constant 0 : index
    %25 = vector.load %arg6[%c8_32, %c0_33] : memref<32x128xf32, #tpu.memory_space<vmem>>, vector<4x128xf32>
    %c4_34 = arith.constant 4 : index
    %c256_35 = arith.constant 256 : index
    %26 = vector.load %arg7[%c4_34, %c256_35] : memref<28x1024xf32, #tpu.memory_space<vmem>>, vector<4x128xf32>
    tpu.vector_store %arg7[%c4_34, %c256_35], %25 {strides = array<i32>} : memref<28x1024xf32, #tpu.memory_space<vmem>>, vector<4x128xf32>,
    %c12_36 = arith.constant 12 : index
    %c0_37 = arith.constant 0 : index
    %27 = vector.load %arg6[%c12_36, %c0_37] : memref<32x128xf32, #tpu.memory_space<vmem>>, vector<4x128xf32>
    %c4_38 = arith.constant 4 : index
    %c384_39 = arith.constant 384 : index
    %28 = vector.load %arg7[%c4_38, %c384_39] : memref<28x1024xf32, #tpu.memory_space<vmem>>, vector<4x128xf32>
    tpu.vector_store %arg7[%c4_38, %c384_39], %27 {strides = array<i32>} : memref<28x1024xf32, #tpu.memory_space<vmem>>, vector<4x128xf32>,
    %c16_40 = arith.constant 16 : index
    %c0_41 = arith.constant 0 : index
    %29 = vector.load %arg6[%c16_40, %c0_41] : memref<32x128xf32, #tpu.memory_space<vmem>>, vector<4x128xf32>
    %c4_42 = arith.constant 4 : index
    %c512_43 = arith.constant 512 : index
    %30 = vector.load %arg7[%c4_42, %c512_43] : memref<28x1024xf32, #tpu.memory_space<vmem>>, vector<4x128xf32>
    tpu.vector_store %arg7[%c4_42, %c512_43], %29 {strides = array<i32>} : memref<28x1024xf32, #tpu.memory_space<vmem>>, vector<4x128xf32>,
    %c20_44 = arith.constant 20 : index
    %c0_45 = arith.constant 0 : index
    %31 = vector.load %arg6[%c20_44, %c0_45] : memref<32x128xf32, #tpu.memory_space<vmem>>, vector<4x128xf32>
    %c4_46 = arith.constant 4 : index
    %c640_47 = arith.constant 640 : index
    %32 = vector.load %arg7[%c4_46, %c640_47] : memref<28x1024xf32, #tpu.memory_space<vmem>>, vector<4x128xf32>
    tpu.vector_store %arg7[%c4_46, %c640_47], %31 {strides = array<i32>} : memref<28x1024xf32, #tpu.memory_space<vmem>>, vector<4x128xf32>,
    %c24_48 = arith.constant 24 : index
    %c0_49 = arith.constant 0 : index
    %33 = vector.load %arg6[%c24_48, %c0_49] : memref<32x128xf32, #tpu.memory_space<vmem>>, vector<4x128xf32>
    %c4_50 = arith.constant 4 : index
    %c768_51 = arith.constant 768 : index
    %34 = vector.load %arg7[%c4_50, %c768_51] : memref<28x1024xf32, #tpu.memory_space<vmem>>, vector<4x128xf32>
    tpu.vector_store %arg7[%c4_50, %c768_51], %33 {strides = array<i32>} : memref<28x1024xf32, #tpu.memory_space<vmem>>, vector<4x128xf32>,
    %c28_52 = arith.constant 28 : index
    %c0_53 = arith.constant 0 : index
    %35 = vector.load %arg6[%c28_52, %c0_53] : memref<32x128xf32, #tpu.memory_space<vmem>>, vector<4x128xf32>
    %c4_54 = arith.constant 4 : index
    %c896_55 = arith.constant 896 : index
    %36 = vector.load %arg7[%c4_54, %c896_55] : memref<28x1024xf32, #tpu.memory_space<vmem>>, vector<4x128xf32>
    tpu.vector_store %arg7[%c4_54, %c896_55], %35 {strides = array<i32>} : memref<28x1024xf32, #tpu.memory_space<vmem>>, vector<4x128xf32>,
    %c0_56 = arith.constant 0 : index
    %c0_57 = arith.constant 0 : index
    %37 = vector.load %arg6[%c0_56, %c0_57] : memref<32x128xf32, #tpu.memory_space<vmem>>, vector<32x128xf32>
    %cst_58 = arith.constant dense<0.000000e+00> : vector<32x128xf32>
    %38 = tpu.matmul %37, %17, %cst_58 {dimension_numbers = #tpu.dot_dimension_numbers<[1], [0], [0], [1], [0, 0, 1, 1], [], []>} : vector<32x128xf32>, vector<128x128xf32>, vector<32x128xf32> -> vector<32x128xf32>
    %c0_59 = arith.constant 0 : index
    %c0_60 = arith.constant 0 : index
    %39 = vector.load %arg6[%c0_59, %c0_60] : memref<32x128xf32, #tpu.memory_space<vmem>>, vector<32x128xf32>
    tpu.vector_store %arg6[%c0_59, %c0_60], %38 {strides = array<i32>} : memref<32x128xf32, #tpu.memory_space<vmem>>, vector<32x128xf32>,
    %c0_61 = arith.constant 0 : index
    %c0_62 = arith.constant 0 : index
    %40 = vector.load %arg6[%c0_61, %c0_62] : memref<32x128xf32, #tpu.memory_space<vmem>>, vector<4x128xf32>
    %c8_63 = arith.constant 8 : index
    %c0_64 = arith.constant 0 : index
    %41 = vector.load %arg7[%c8_63, %c0_64] : memref<28x1024xf32, #tpu.memory_space<vmem>>, vector<4x128xf32>
    tpu.vector_store %arg7[%c8_63, %c0_64], %40 {strides = array<i32>} : memref<28x1024xf32, #tpu.memory_space<vmem>>, vector<4x128xf32>,
    %c4_65 = arith.constant 4 : index
    %c0_66 = arith.constant 0 : index
    %42 = vector.load %arg6[%c4_65, %c0_66] : memref<32x128xf32, #tpu.memory_space<vmem>>, vector<4x128xf32>
    %c8_67 = arith.constant 8 : index
    %c128_68 = arith.constant 128 : index
    %43 = vector.load %arg7[%c8_67, %c128_68] : memref<28x1024xf32, #tpu.memory_space<vmem>>, vector<4x128xf32>
    tpu.vector_store %arg7[%c8_67, %c128_68], %42 {strides = array<i32>} : memref<28x1024xf32, #tpu.memory_space<vmem>>, vector<4x128xf32>,
    %c8_69 = arith.constant 8 : index
    %c0_70 = arith.constant 0 : index
    %44 = vector.load %arg6[%c8_69, %c0_70] : memref<32x128xf32, #tpu.memory_space<vmem>>, vector<4x128xf32>
    %c8_71 = arith.constant 8 : index
    %c256_72 = arith.constant 256 : index
    %45 = vector.load %arg7[%c8_71, %c256_72] : memref<28x1024xf32, #tpu.memory_space<vmem>>, vector<4x128xf32>
    tpu.vector_store %arg7[%c8_71, %c256_72], %44 {strides = array<i32>} : memref<28x1024xf32, #tpu.memory_space<vmem>>, vector<4x128xf32>,
    %c12_73 = arith.constant 12 : index
    %c0_74 = arith.constant 0 : index
    %46 = vector.load %arg6[%c12_73, %c0_74] : memref<32x128xf32, #tpu.memory_space<vmem>>, vector<4x128xf32>
    %c8_75 = arith.constant 8 : index
    %c384_76 = arith.constant 384 : index
    %47 = vector.load %arg7[%c8_75, %c384_76] : memref<28x1024xf32, #tpu.memory_space<vmem>>, vector<4x128xf32>
    tpu.vector_store %arg7[%c8_75, %c384_76], %46 {strides = array<i32>} : memref<28x1024xf32, #tpu.memory_space<vmem>>, vector<4x128xf32>,
    %c16_77 = arith.constant 16 : index
    %c0_78 = arith.constant 0 : index
    %48 = vector.load %arg6[%c16_77, %c0_78] : memref<32x128xf32, #tpu.memory_space<vmem>>, vector<4x128xf32>
    %c8_79 = arith.constant 8 : index
    %c512_80 = arith.constant 512 : index
    %49 = vector.load %arg7[%c8_79, %c512_80] : memref<28x1024xf32, #tpu.memory_space<vmem>>, vector<4x128xf32>
    tpu.vector_store %arg7[%c8_79, %c512_80], %48 {strides = array<i32>} : memref<28x1024xf32, #tpu.memory_space<vmem>>, vector<4x128xf32>,
    %c20_81 = arith.constant 20 : index
    %c0_82 = arith.constant 0 : index
    %50 = vector.load %arg6[%c20_81, %c0_82] : memref<32x128xf32, #tpu.memory_space<vmem>>, vector<4x128xf32>
    %c8_83 = arith.constant 8 : index
    %c640_84 = arith.constant 640 : index
    %51 = vector.load %arg7[%c8_83, %c640_84] : memref<28x1024xf32, #tpu.memory_space<vmem>>, vector<4x128xf32>
    tpu.vector_store %arg7[%c8_83, %c640_84], %50 {strides = array<i32>} : memref<28x1024xf32, #tpu.memory_space<vmem>>, vector<4x128xf32>,
    %c24_85 = arith.constant 24 : index
    %c0_86 = arith.constant 0 : index
    %52 = vector.load %arg6[%c24_85, %c0_86] : memref<32x128xf32, #tpu.memory_space<vmem>>, vector<4x128xf32>
    %c8_87 = arith.constant 8 : index
    %c768_88 = arith.constant 768 : index
    %53 = vector.load %arg7[%c8_87, %c768_88] : memref<28x1024xf32, #tpu.memory_space<vmem>>, vector<4x128xf32>
    tpu.vector_store %arg7[%c8_87, %c768_88], %52 {strides = array<i32>} : memref<28x1024xf32, #tpu.memory_space<vmem>>, vector<4x128xf32>,
    %c28_89 = arith.constant 28 : index
    %c0_90 = arith.constant 0 : index
    %54 = vector.load %arg6[%c28_89, %c0_90] : memref<32x128xf32, #tpu.memory_space<vmem>>, vector<4x128xf32>
    %c8_91 = arith.constant 8 : index
    %c896_92 = arith.constant 896 : index
    %55 = vector.load %arg7[%c8_91, %c896_92] : memref<28x1024xf32, #tpu.memory_space<vmem>>, vector<4x128xf32>
    tpu.vector_store %arg7[%c8_91, %c896_92], %54 {strides = array<i32>} : memref<28x1024xf32, #tpu.memory_space<vmem>>, vector<4x128xf32>,
    %c1 = arith.constant 1 : index
    %c0_93 = arith.constant 0 : index
    %c0_94 = arith.constant 0 : index
    %56 = vector.load %arg2[%c1, %c0_93, %c0_94] : memref<3x128x128xf32, #tpu.memory_space<vmem>>, vector<1x128x128xf32>
    %57 = vector.shape_cast %56 : vector<1x128x128xf32> to vector<128x128xf32>
    %c0_95 = arith.constant 0 : index
    %c0_96 = arith.constant 0 : index
    %58 = vector.load %arg1[%c0_95, %c0_96] : memref<32x128xf32, #tpu.memory_space<vmem>>, vector<32x128xf32>
    %cst_97 = arith.constant dense<0.000000e+00> : vector<32x128xf32>
    %59 = tpu.matmul %58, %57, %cst_97 {dimension_numbers = #tpu.dot_dimension_numbers<[1], [0], [0], [1], [0, 0, 1, 1], [], []>} : vector<32x128xf32>, vector<128x128xf32>, vector<32x128xf32> -> vector<32x128xf32>
    %c0_98 = arith.constant 0 : index
    %c0_99 = arith.constant 0 : index
    %60 = vector.load %arg6[%c0_98, %c0_99] : memref<32x128xf32, #tpu.memory_space<vmem>>, vector<32x128xf32>
    tpu.vector_store %arg6[%c0_98, %c0_99], %59 {strides = array<i32>} : memref<32x128xf32, #tpu.memory_space<vmem>>, vector<32x128xf32>,
    %c0_100 = arith.constant 0 : index
    %c0_101 = arith.constant 0 : index
    %61 = vector.load %arg6[%c0_100, %c0_101] : memref<32x128xf32, #tpu.memory_space<vmem>>, vector<4x128xf32>
    %c12_102 = arith.constant 12 : index
    %c0_103 = arith.constant 0 : index
    %62 = vector.load %arg7[%c12_102, %c0_103] : memref<28x1024xf32, #tpu.memory_space<vmem>>, vector<4x128xf32>
    tpu.vector_store %arg7[%c12_102, %c0_103], %61 {strides = array<i32>} : memref<28x1024xf32, #tpu.memory_space<vmem>>, vector<4x128xf32>,
    %c4_104 = arith.constant 4 : index
    %c0_105 = arith.constant 0 : index
    %63 = vector.load %arg6[%c4_104, %c0_105] : memref<32x128xf32, #tpu.memory_space<vmem>>, vector<4x128xf32>
    %c12_106 = arith.constant 12 : index
    %c128_107 = arith.constant 128 : index
    %64 = vector.load %arg7[%c12_106, %c128_107] : memref<28x1024xf32, #tpu.memory_space<vmem>>, vector<4x128xf32>
    tpu.vector_store %arg7[%c12_106, %c128_107], %63 {strides = array<i32>} : memref<28x1024xf32, #tpu.memory_space<vmem>>, vector<4x128xf32>,
    %c8_108 = arith.constant 8 : index
    %c0_109 = arith.constant 0 : index
    %65 = vector.load %arg6[%c8_108, %c0_109] : memref<32x128xf32, #tpu.memory_space<vmem>>, vector<4x128xf32>
    %c12_110 = arith.constant 12 : index
    %c256_111 = arith.constant 256 : index
    %66 = vector.load %arg7[%c12_110, %c256_111] : memref<28x1024xf32, #tpu.memory_space<vmem>>, vector<4x128xf32>
    tpu.vector_store %arg7[%c12_110, %c256_111], %65 {strides = array<i32>} : memref<28x1024xf32, #tpu.memory_space<vmem>>, vector<4x128xf32>,
    %c12_112 = arith.constant 12 : index
    %c0_113 = arith.constant 0 : index
    %67 = vector.load %arg6[%c12_112, %c0_113] : memref<32x128xf32, #tpu.memory_space<vmem>>, vector<4x128xf32>
    %c12_114 = arith.constant 12 : index
    %c384_115 = arith.constant 384 : index
    %68 = vector.load %arg7[%c12_114, %c384_115] : memref<28x1024xf32, #tpu.memory_space<vmem>>, vector<4x128xf32>
    tpu.vector_store %arg7[%c12_114, %c384_115], %67 {strides = array<i32>} : memref<28x1024xf32, #tpu.memory_space<vmem>>, vector<4x128xf32>,
    %c16_116 = arith.constant 16 : index
    %c0_117 = arith.constant 0 : index
    %69 = vector.load %arg6[%c16_116, %c0_117] : memref<32x128xf32, #tpu.memory_space<vmem>>, vector<4x128xf32>
    %c12_118 = arith.constant 12 : index
    %c512_119 = arith.constant 512 : index
    %70 = vector.load %arg7[%c12_118, %c512_119] : memref<28x1024xf32, #tpu.memory_space<vmem>>, vector<4x128xf32>
    tpu.vector_store %arg7[%c12_118, %c512_119], %69 {strides = array<i32>} : memref<28x1024xf32, #tpu.memory_space<vmem>>, vector<4x128xf32>,
    %c20_120 = arith.constant 20 : index
    %c0_121 = arith.constant 0 : index
    %71 = vector.load %arg6[%c20_120, %c0_121] : memref<32x128xf32, #tpu.memory_space<vmem>>, vector<4x128xf32>
    %c12_122 = arith.constant 12 : index
    %c640_123 = arith.constant 640 : index
    %72 = vector.load %arg7[%c12_122, %c640_123] : memref<28x1024xf32, #tpu.memory_space<vmem>>, vector<4x128xf32>
    tpu.vector_store %arg7[%c12_122, %c640_123], %71 {strides = array<i32>} : memref<28x1024xf32, #tpu.memory_space<vmem>>, vector<4x128xf32>,
    %c24_124 = arith.constant 24 : index
    %c0_125 = arith.constant 0 : index
    %73 = vector.load %arg6[%c24_124, %c0_125] : memref<32x128xf32, #tpu.memory_space<vmem>>, vector<4x128xf32>
    %c12_126 = arith.constant 12 : index
    %c768_127 = arith.constant 768 : index
    %74 = vector.load %arg7[%c12_126, %c768_127] : memref<28x1024xf32, #tpu.memory_space<vmem>>, vector<4x128xf32>
    tpu.vector_store %arg7[%c12_126, %c768_127], %73 {strides = array<i32>} : memref<28x1024xf32, #tpu.memory_space<vmem>>, vector<4x128xf32>,
    %c28_128 = arith.constant 28 : index
    %c0_129 = arith.constant 0 : index
    %75 = vector.load %arg6[%c28_128, %c0_129] : memref<32x128xf32, #tpu.memory_space<vmem>>, vector<4x128xf32>
    %c12_130 = arith.constant 12 : index
    %c896_131 = arith.constant 896 : index
    %76 = vector.load %arg7[%c12_130, %c896_131] : memref<28x1024xf32, #tpu.memory_space<vmem>>, vector<4x128xf32>
    tpu.vector_store %arg7[%c12_130, %c896_131], %75 {strides = array<i32>} : memref<28x1024xf32, #tpu.memory_space<vmem>>, vector<4x128xf32>,
    %c0_132 = arith.constant 0 : index
    %c0_133 = arith.constant 0 : index
    %77 = vector.load %arg6[%c0_132, %c0_133] : memref<32x128xf32, #tpu.memory_space<vmem>>, vector<32x128xf32>
    %cst_134 = arith.constant dense<0.000000e+00> : vector<32x128xf32>
    %78 = tpu.matmul %77, %57, %cst_134 {dimension_numbers = #tpu.dot_dimension_numbers<[1], [0], [0], [1], [0, 0, 1, 1], [], []>} : vector<32x128xf32>, vector<128x128xf32>, vector<32x128xf32> -> vector<32x128xf32>
    %c0_135 = arith.constant 0 : index
    %c0_136 = arith.constant 0 : index
    %79 = vector.load %arg6[%c0_135, %c0_136] : memref<32x128xf32, #tpu.memory_space<vmem>>, vector<32x128xf32>
    tpu.vector_store %arg6[%c0_135, %c0_136], %78 {strides = array<i32>} : memref<32x128xf32, #tpu.memory_space<vmem>>, vector<32x128xf32>,
    %c0_137 = arith.constant 0 : index
    %c0_138 = arith.constant 0 : index
    %80 = vector.load %arg6[%c0_137, %c0_138] : memref<32x128xf32, #tpu.memory_space<vmem>>, vector<4x128xf32>
    %c16_139 = arith.constant 16 : index
    %c0_140 = arith.constant 0 : index
    %81 = vector.load %arg7[%c16_139, %c0_140] : memref<28x1024xf32, #tpu.memory_space<vmem>>, vector<4x128xf32>
    tpu.vector_store %arg7[%c16_139, %c0_140], %80 {strides = array<i32>} : memref<28x1024xf32, #tpu.memory_space<vmem>>, vector<4x128xf32>,
    %c4_141 = arith.constant 4 : index
    %c0_142 = arith.constant 0 : index
    %82 = vector.load %arg6[%c4_141, %c0_142] : memref<32x128xf32, #tpu.memory_space<vmem>>, vector<4x128xf32>
    %c16_143 = arith.constant 16 : index
    %c128_144 = arith.constant 128 : index
    %83 = vector.load %arg7[%c16_143, %c128_144] : memref<28x1024xf32, #tpu.memory_space<vmem>>, vector<4x128xf32>
    tpu.vector_store %arg7[%c16_143, %c128_144], %82 {strides = array<i32>} : memref<28x1024xf32, #tpu.memory_space<vmem>>, vector<4x128xf32>,
    %c8_145 = arith.constant 8 : index
    %c0_146 = arith.constant 0 : index
    %84 = vector.load %arg6[%c8_145, %c0_146] : memref<32x128xf32, #tpu.memory_space<vmem>>, vector<4x128xf32>
    %c16_147 = arith.constant 16 : index
    %c256_148 = arith.constant 256 : index
    %85 = vector.load %arg7[%c16_147, %c256_148] : memref<28x1024xf32, #tpu.memory_space<vmem>>, vector<4x128xf32>
    tpu.vector_store %arg7[%c16_147, %c256_148], %84 {strides = array<i32>} : memref<28x1024xf32, #tpu.memory_space<vmem>>, vector<4x128xf32>,
    %c12_149 = arith.constant 12 : index
    %c0_150 = arith.constant 0 : index
    %86 = vector.load %arg6[%c12_149, %c0_150] : memref<32x128xf32, #tpu.memory_space<vmem>>, vector<4x128xf32>
    %c16_151 = arith.constant 16 : index
    %c384_152 = arith.constant 384 : index
    %87 = vector.load %arg7[%c16_151, %c384_152] : memref<28x1024xf32, #tpu.memory_space<vmem>>, vector<4x128xf32>
    tpu.vector_store %arg7[%c16_151, %c384_152], %86 {strides = array<i32>} : memref<28x1024xf32, #tpu.memory_space<vmem>>, vector<4x128xf32>,
    %c16_153 = arith.constant 16 : index
    %c0_154 = arith.constant 0 : index
    %88 = vector.load %arg6[%c16_153, %c0_154] : memref<32x128xf32, #tpu.memory_space<vmem>>, vector<4x128xf32>
    %c16_155 = arith.constant 16 : index
    %c512_156 = arith.constant 512 : index
    %89 = vector.load %arg7[%c16_155, %c512_156] : memref<28x1024xf32, #tpu.memory_space<vmem>>, vector<4x128xf32>
    tpu.vector_store %arg7[%c16_155, %c512_156], %88 {strides = array<i32>} : memref<28x1024xf32, #tpu.memory_space<vmem>>, vector<4x128xf32>,
    %c20_157 = arith.constant 20 : index
    %c0_158 = arith.constant 0 : index
    %90 = vector.load %arg6[%c20_157, %c0_158] : memref<32x128xf32, #tpu.memory_space<vmem>>, vector<4x128xf32>
    %c16_159 = arith.constant 16 : index
    %c640_160 = arith.constant 640 : index
    %91 = vector.load %arg7[%c16_159, %c640_160] : memref<28x1024xf32, #tpu.memory_space<vmem>>, vector<4x128xf32>
    tpu.vector_store %arg7[%c16_159, %c640_160], %90 {strides = array<i32>} : memref<28x1024xf32, #tpu.memory_space<vmem>>, vector<4x128xf32>,
    %c24_161 = arith.constant 24 : index
    %c0_162 = arith.constant 0 : index
    %92 = vector.load %arg6[%c24_161, %c0_162] : memref<32x128xf32, #tpu.memory_space<vmem>>, vector<4x128xf32>
    %c16_163 = arith.constant 16 : index
    %c768_164 = arith.constant 768 : index
    %93 = vector.load %arg7[%c16_163, %c768_164] : memref<28x1024xf32, #tpu.memory_space<vmem>>, vector<4x128xf32>
    tpu.vector_store %arg7[%c16_163, %c768_164], %92 {strides = array<i32>} : memref<28x1024xf32, #tpu.memory_space<vmem>>, vector<4x128xf32>,
    %c28_165 = arith.constant 28 : index
    %c0_166 = arith.constant 0 : index
    %94 = vector.load %arg6[%c28_165, %c0_166] : memref<32x128xf32, #tpu.memory_space<vmem>>, vector<4x128xf32>
    %c16_167 = arith.constant 16 : index
    %c896_168 = arith.constant 896 : index
    %95 = vector.load %arg7[%c16_167, %c896_168] : memref<28x1024xf32, #tpu.memory_space<vmem>>, vector<4x128xf32>
    tpu.vector_store %arg7[%c16_167, %c896_168], %94 {strides = array<i32>} : memref<28x1024xf32, #tpu.memory_space<vmem>>, vector<4x128xf32>,
    %c2 = arith.constant 2 : index
    %c0_169 = arith.constant 0 : index
    %c0_170 = arith.constant 0 : index
    %96 = vector.load %arg2[%c2, %c0_169, %c0_170] : memref<3x128x128xf32, #tpu.memory_space<vmem>>, vector<1x128x128xf32>
    %97 = vector.shape_cast %96 : vector<1x128x128xf32> to vector<128x128xf32>
    %c0_171 = arith.constant 0 : index
    %c0_172 = arith.constant 0 : index
    %98 = vector.load %arg1[%c0_171, %c0_172] : memref<32x128xf32, #tpu.memory_space<vmem>>, vector<32x128xf32>
    %cst_173 = arith.constant dense<0.000000e+00> : vector<32x128xf32>
    %99 = tpu.matmul %98, %97, %cst_173 {dimension_numbers = #tpu.dot_dimension_numbers<[1], [0], [0], [1], [0, 0, 1, 1], [], []>} : vector<32x128xf32>, vector<128x128xf32>, vector<32x128xf32> -> vector<32x128xf32>
    %c0_174 = arith.constant 0 : index
    %c0_175 = arith.constant 0 : index
    %100 = vector.load %arg6[%c0_174, %c0_175] : memref<32x128xf32, #tpu.memory_space<vmem>>, vector<32x128xf32>
    tpu.vector_store %arg6[%c0_174, %c0_175], %99 {strides = array<i32>} : memref<32x128xf32, #tpu.memory_space<vmem>>, vector<32x128xf32>,
    %c0_176 = arith.constant 0 : index
    %c0_177 = arith.constant 0 : index
    %101 = vector.load %arg6[%c0_176, %c0_177] : memref<32x128xf32, #tpu.memory_space<vmem>>, vector<4x128xf32>
    %c20_178 = arith.constant 20 : index
    %c0_179 = arith.constant 0 : index
    %102 = vector.load %arg7[%c20_178, %c0_179] : memref<28x1024xf32, #tpu.memory_space<vmem>>, vector<4x128xf32>
    tpu.vector_store %arg7[%c20_178, %c0_179], %101 {strides = array<i32>} : memref<28x1024xf32, #tpu.memory_space<vmem>>, vector<4x128xf32>,
    %c4_180 = arith.constant 4 : index
    %c0_181 = arith.constant 0 : index
    %103 = vector.load %arg6[%c4_180, %c0_181] : memref<32x128xf32, #tpu.memory_space<vmem>>, vector<4x128xf32>
    %c20_182 = arith.constant 20 : index
    %c128_183 = arith.constant 128 : index
    %104 = vector.load %arg7[%c20_182, %c128_183] : memref<28x1024xf32, #tpu.memory_space<vmem>>, vector<4x128xf32>
    tpu.vector_store %arg7[%c20_182, %c128_183], %103 {strides = array<i32>} : memref<28x1024xf32, #tpu.memory_space<vmem>>, vector<4x128xf32>,
    %c8_184 = arith.constant 8 : index
    %c0_185 = arith.constant 0 : index
    %105 = vector.load %arg6[%c8_184, %c0_185] : memref<32x128xf32, #tpu.memory_space<vmem>>, vector<4x128xf32>
    %c20_186 = arith.constant 20 : index
    %c256_187 = arith.constant 256 : index
    %106 = vector.load %arg7[%c20_186, %c256_187] : memref<28x1024xf32, #tpu.memory_space<vmem>>, vector<4x128xf32>
    tpu.vector_store %arg7[%c20_186, %c256_187], %105 {strides = array<i32>} : memref<28x1024xf32, #tpu.memory_space<vmem>>, vector<4x128xf32>,
    %c12_188 = arith.constant 12 : index
    %c0_189 = arith.constant 0 : index
    %107 = vector.load %arg6[%c12_188, %c0_189] : memref<32x128xf32, #tpu.memory_space<vmem>>, vector<4x128xf32>
    %c20_190 = arith.constant 20 : index
    %c384_191 = arith.constant 384 : index
    %108 = vector.load %arg7[%c20_190, %c384_191] : memref<28x1024xf32, #tpu.memory_space<vmem>>, vector<4x128xf32>
    tpu.vector_store %arg7[%c20_190, %c384_191], %107 {strides = array<i32>} : memref<28x1024xf32, #tpu.memory_space<vmem>>, vector<4x128xf32>,
    %c16_192 = arith.constant 16 : index
    %c0_193 = arith.constant 0 : index
    %109 = vector.load %arg6[%c16_192, %c0_193] : memref<32x128xf32, #tpu.memory_space<vmem>>, vector<4x128xf32>
    %c20_194 = arith.constant 20 : index
    %c512_195 = arith.constant 512 : index
    %110 = vector.load %arg7[%c20_194, %c512_195] : memref<28x1024xf32, #tpu.memory_space<vmem>>, vector<4x128xf32>
    tpu.vector_store %arg7[%c20_194, %c512_195], %109 {strides = array<i32>} : memref<28x1024xf32, #tpu.memory_space<vmem>>, vector<4x128xf32>,
    %c20_196 = arith.constant 20 : index
    %c0_197 = arith.constant 0 : index
    %111 = vector.load %arg6[%c20_196, %c0_197] : memref<32x128xf32, #tpu.memory_space<vmem>>, vector<4x128xf32>
    %c20_198 = arith.constant 20 : index
    %c640_199 = arith.constant 640 : index
    %112 = vector.load %arg7[%c20_198, %c640_199] : memref<28x1024xf32, #tpu.memory_space<vmem>>, vector<4x128xf32>
    tpu.vector_store %arg7[%c20_198, %c640_199], %111 {strides = array<i32>} : memref<28x1024xf32, #tpu.memory_space<vmem>>, vector<4x128xf32>,
    %c24_200 = arith.constant 24 : index
    %c0_201 = arith.constant 0 : index
    %113 = vector.load %arg6[%c24_200, %c0_201] : memref<32x128xf32, #tpu.memory_space<vmem>>, vector<4x128xf32>
    %c20_202 = arith.constant 20 : index
    %c768_203 = arith.constant 768 : index
    %114 = vector.load %arg7[%c20_202, %c768_203] : memref<28x1024xf32, #tpu.memory_space<vmem>>, vector<4x128xf32>
    tpu.vector_store %arg7[%c20_202, %c768_203], %113 {strides = array<i32>} : memref<28x1024xf32, #tpu.memory_space<vmem>>, vector<4x128xf32>,
    %c28_204 = arith.constant 28 : index
    %c0_205 = arith.constant 0 : index
    %115 = vector.load %arg6[%c28_204, %c0_205] : memref<32x128xf32, #tpu.memory_space<vmem>>, vector<4x128xf32>
    %c20_206 = arith.constant 20 : index
    %c896_207 = arith.constant 896 : index
    %116 = vector.load %arg7[%c20_206, %c896_207] : memref<28x1024xf32, #tpu.memory_space<vmem>>, vector<4x128xf32>
    tpu.vector_store %arg7[%c20_206, %c896_207], %115 {strides = array<i32>} : memref<28x1024xf32, #tpu.memory_space<vmem>>, vector<4x128xf32>,
    %c0_208 = arith.constant 0 : index
    %c0_209 = arith.constant 0 : index
    %117 = vector.load %arg6[%c0_208, %c0_209] : memref<32x128xf32, #tpu.memory_space<vmem>>, vector<32x128xf32>
    %cst_210 = arith.constant dense<0.000000e+00> : vector<32x128xf32>
    %118 = tpu.matmul %117, %97, %cst_210 {dimension_numbers = #tpu.dot_dimension_numbers<[1], [0], [0], [1], [0, 0, 1, 1], [], []>} : vector<32x128xf32>, vector<128x128xf32>, vector<32x128xf32> -> vector<32x128xf32>
    %c0_211 = arith.constant 0 : index
    %c0_212 = arith.constant 0 : index
    %119 = vector.load %arg6[%c0_211, %c0_212] : memref<32x128xf32, #tpu.memory_space<vmem>>, vector<32x128xf32>
    tpu.vector_store %arg6[%c0_211, %c0_212], %118 {strides = array<i32>} : memref<32x128xf32, #tpu.memory_space<vmem>>, vector<32x128xf32>,
    %c0_213 = arith.constant 0 : index
    %c0_214 = arith.constant 0 : index
    %120 = vector.load %arg6[%c0_213, %c0_214] : memref<32x128xf32, #tpu.memory_space<vmem>>, vector<4x128xf32>
    %c24_215 = arith.constant 24 : index
    %c0_216 = arith.constant 0 : index
    %121 = vector.load %arg7[%c24_215, %c0_216] : memref<28x1024xf32, #tpu.memory_space<vmem>>, vector<4x128xf32>
    tpu.vector_store %arg7[%c24_215, %c0_216], %120 {strides = array<i32>} : memref<28x1024xf32, #tpu.memory_space<vmem>>, vector<4x128xf32>,
    %c4_217 = arith.constant 4 : index
    %c0_218 = arith.constant 0 : index
    %122 = vector.load %arg6[%c4_217, %c0_218] : memref<32x128xf32, #tpu.memory_space<vmem>>, vector<4x128xf32>
    %c24_219 = arith.constant 24 : index
    %c128_220 = arith.constant 128 : index
    %123 = vector.load %arg7[%c24_219, %c128_220] : memref<28x1024xf32, #tpu.memory_space<vmem>>, vector<4x128xf32>
    tpu.vector_store %arg7[%c24_219, %c128_220], %122 {strides = array<i32>} : memref<28x1024xf32, #tpu.memory_space<vmem>>, vector<4x128xf32>,
    %c8_221 = arith.constant 8 : index
    %c0_222 = arith.constant 0 : index
    %124 = vector.load %arg6[%c8_221, %c0_222] : memref<32x128xf32, #tpu.memory_space<vmem>>, vector<4x128xf32>
    %c24_223 = arith.constant 24 : index
    %c256_224 = arith.constant 256 : index
    %125 = vector.load %arg7[%c24_223, %c256_224] : memref<28x1024xf32, #tpu.memory_space<vmem>>, vector<4x128xf32>
    tpu.vector_store %arg7[%c24_223, %c256_224], %124 {strides = array<i32>} : memref<28x1024xf32, #tpu.memory_space<vmem>>, vector<4x128xf32>,
    %c12_225 = arith.constant 12 : index
    %c0_226 = arith.constant 0 : index
    %126 = vector.load %arg6[%c12_225, %c0_226] : memref<32x128xf32, #tpu.memory_space<vmem>>, vector<4x128xf32>
    %c24_227 = arith.constant 24 : index
    %c384_228 = arith.constant 384 : index
    %127 = vector.load %arg7[%c24_227, %c384_228] : memref<28x1024xf32, #tpu.memory_space<vmem>>, vector<4x128xf32>
    tpu.vector_store %arg7[%c24_227, %c384_228], %126 {strides = array<i32>} : memref<28x1024xf32, #tpu.memory_space<vmem>>, vector<4x128xf32>,
    %c16_229 = arith.constant 16 : index
    %c0_230 = arith.constant 0 : index
    %128 = vector.load %arg6[%c16_229, %c0_230] : memref<32x128xf32, #tpu.memory_space<vmem>>, vector<4x128xf32>
    %c24_231 = arith.constant 24 : index
    %c512_232 = arith.constant 512 : index
    %129 = vector.load %arg7[%c24_231, %c512_232] : memref<28x1024xf32, #tpu.memory_space<vmem>>, vector<4x128xf32>
    tpu.vector_store %arg7[%c24_231, %c512_232], %128 {strides = array<i32>} : memref<28x1024xf32, #tpu.memory_space<vmem>>, vector<4x128xf32>,
    %c20_233 = arith.constant 20 : index
    %c0_234 = arith.constant 0 : index
    %130 = vector.load %arg6[%c20_233, %c0_234] : memref<32x128xf32, #tpu.memory_space<vmem>>, vector<4x128xf32>
    %c24_235 = arith.constant 24 : index
    %c640_236 = arith.constant 640 : index
    %131 = vector.load %arg7[%c24_235, %c640_236] : memref<28x1024xf32, #tpu.memory_space<vmem>>, vector<4x128xf32>
    tpu.vector_store %arg7[%c24_235, %c640_236], %130 {strides = array<i32>} : memref<28x1024xf32, #tpu.memory_space<vmem>>, vector<4x128xf32>,
    %c24_237 = arith.constant 24 : index
    %c0_238 = arith.constant 0 : index
    %132 = vector.load %arg6[%c24_237, %c0_238] : memref<32x128xf32, #tpu.memory_space<vmem>>, vector<4x128xf32>
    %c24_239 = arith.constant 24 : index
    %c768_240 = arith.constant 768 : index
    %133 = vector.load %arg7[%c24_239, %c768_240] : memref<28x1024xf32, #tpu.memory_space<vmem>>, vector<4x128xf32>
    tpu.vector_store %arg7[%c24_239, %c768_240], %132 {strides = array<i32>} : memref<28x1024xf32, #tpu.memory_space<vmem>>, vector<4x128xf32>,
    %c28_241 = arith.constant 28 : index
    %c0_242 = arith.constant 0 : index
    %134 = vector.load %arg6[%c28_241, %c0_242] : memref<32x128xf32, #tpu.memory_space<vmem>>, vector<4x128xf32>
    %c24_243 = arith.constant 24 : index
    %c896_244 = arith.constant 896 : index
    %135 = vector.load %arg7[%c24_243, %c896_244] : memref<28x1024xf32, #tpu.memory_space<vmem>>, vector<4x128xf32>
    tpu.vector_store %arg7[%c24_243, %c896_244], %134 {strides = array<i32>} : memref<28x1024xf32, #tpu.memory_space<vmem>>, vector<4x128xf32>,
    %c0_245 = arith.constant 0 : index
    %c0_246 = arith.constant 0 : index
    %136 = vector.load %arg3[%c0_245, %c0_246] : memref<32x28xf32, #tpu.memory_space<vmem>>, vector<32x28xf32>
    %c0_247 = arith.constant 0 : index
    %c0_248 = arith.constant 0 : index
    %137 = vector.load %arg7[%c0_247, %c0_248] : memref<28x1024xf32, #tpu.memory_space<vmem>>, vector<28x1024xf32>
    %cst_249 = arith.constant dense<0.000000e+00> : vector<32x1024xf32>
    %138 = tpu.matmul %136, %137, %cst_249 {dimension_numbers = #tpu.dot_dimension_numbers<[1], [0], [0], [1], [0, 0, 1, 1], [], []>} : vector<32x28xf32>, vector<28x1024xf32>, vector<32x1024xf32> -> vector<32x1024xf32>
    %c0_250 = arith.constant 0 : index
    %c0_251 = arith.constant 0 : index
    %139 = vector.load %arg4[%c0_250, %c0_251] : memref<32x1xf32, #tpu.memory_space<vmem>>, vector<32x1xf32>
    %140 = vector.broadcast %139 : vector<32x1xf32> to vector<32x1024xf32>
    %141 = arith.addf %138, %140 : vector<32x1024xf32>
    %c0_252 = arith.constant 0 : index
    %c0_253 = arith.constant 0 : index
    %142 = vector.load %arg5[%c0_252, %c0_253] : memref<32x1024xf32, #tpu.memory_space<vmem>>, vector<32x1024xf32>
    tpu.vector_store %arg5[%c0_252, %c0_253], %141 {strides = array<i32>} : memref<32x1024xf32, #tpu.memory_space<vmem>>, vector<32x1024xf32>,
    return
  }
  func.func @transform_0(%arg0: i32) -> (i32, i32) {
    %c0_i32 = arith.constant 0 : i32
    %c0_i32_0 = arith.constant 0 : i32
    return %arg0, %c0_i32 : i32, i32
  }
  func.func @transform_1(%arg0: i32) -> (i32, i32, i32) {
    %c0_i32 = arith.constant 0 : i32
    %c0_i32_0 = arith.constant 0 : i32
    %c0_i32_1 = arith.constant 0 : i32
    %c0_i32_2 = arith.constant 0 : i32
    return %c0_i32, %c0_i32_0, %c0_i32_1 : i32, i32, i32
  }
  func.func @transform_2(%arg0: i32) -> (i32, i32) {
    %c0_i32 = arith.constant 0 : i32
    %c0_i32_0 = arith.constant 0 : i32
    %c0_i32_1 = arith.constant 0 : i32
    return %c0_i32, %c0_i32_0 : i32, i32
  }
  func.func @transform_3(%arg0: i32) -> (i32, i32) {
    %c0_i32 = arith.constant 0 : i32
    %c0_i32_0 = arith.constant 0 : i32
    %c0_i32_1 = arith.constant 0 : i32
    return %c0_i32, %c0_i32_0 : i32, i32
  }
  func.func @transform_4(%arg0: i32) -> (i32, i32) {
    %c0_i32 = arith.constant 0 : i32
    %c0_i32_0 = arith.constant 0 : i32
    return %c0_i32, %arg0 : i32, i32
  }
}

</mosaic_0001>

<llo_original>
// kernel: tpu_custom_call.1
$region0: #{tpu_custom_call.1}
  #allocation0 [shape = 'u32[]', space=smem, size = 0x4, offset = 0x4, fixed_abs, tag = 'smem constant byte address 0x4 - core index']
  #allocation1 [shape = 'u32[144,128]{1,0:T(1,128)}', space=vmem, size = 0x12000, scoped, tag = 'internal scratch']
  #allocation2 [shape = 'f32[32,128]{1,0:T(8,128)}', space=vmem, size = 0x4000, scoped, tag = 'scratch operand']
  #allocation3 [shape = 'f32[28,1024]{1,0:T(8,128)}', space=vmem, size = 0x20000, scoped, tag = 'scratch operand']
  %s0 = inlined_call_operand.hbm [shape: f32[64,128], index: 0, kind: input, shape index: {}]
  %s1 = inlined_call_operand.hbm [shape: f32[3,128,128], index: 1, kind: input, shape index: {}]
  %s2 = inlined_call_operand.vmem [shape: f32[32,28], index: 2, kind: input, shape index: {}]
  %s3 = inlined_call_operand.vmem [shape: f32[32,1], index: 3, kind: input, shape index: {}]
  %s4 = inlined_call_operand.hbm [shape: f32[32,2048], index: 4, kind: output, shape index: {}]
  %s5 = sld [smem:[#allocation0]]
  $region57: #{tpu_custom_call.1} parent=0
    _
  %s7 = ssub.s32 1, %s5
  %s8 = scalar_select 0, %s7, %s5
  $region1: #{tpu_custom_call.1} parent=0
    #allocation4 [shape = 'u8[32768]{0}', space=vmem, size = 0x8000, scoped, tag = 'input window, operand 0']
    #allocation5 [shape = 's32[2]{0}', space=sflag, size = 0x8, scoped, tag = 'scoped memory for tpu_custom_call.1']
    #allocation6 [shape = 's32[2]{0}', space=sflag, size = 0x8, scoped, tag = 'scoped memory for tpu_custom_call.1']
    #allocation7 [shape = 'u8[196608]{0}', space=vmem, size = 0x30000, scoped, tag = 'input window, operand 1, single buffered']
    #allocation8 [shape = 's32[1]{0}', space=sflag, size = 0x4, scoped, tag = 'scoped memory for tpu_custom_call.1']
    #allocation9 [shape = 'u8[262144]{0}', space=vmem, size = 0x40000, scoped, tag = 'output window, operand 0']
    %9 = vsyncpa [#allocation5], 0
    %s10 = scalar_lea.sflag [#allocation5], 1
    %11 = vsyncpa %s10, 0
    %12 = vsyncpa [#allocation8], 0
    %13 = vsyncpa [#allocation6], 0
    %s14 = scalar_lea.sflag [#allocation6], 1
    %15 = vsyncpa %s14, 0
    loop: start=0, step=1, limit=4
    $region2: #{tpu_custom_call.1} parent=1 // loop_pre_header
      _
    $region3: #{tpu_custom_call.1} parent=1 // loop_header
      %s17 = sphi 0, %s21
      %p18 = scmp.ge.s32.totalorder %s17, 4
      %s27 = sphi 0, %s29
      %s30 = sphi 0, %s27
      %s31 = sphi 0, %s30
      %s47 = sphi 0, %s31
      %s51 = sphi 0, %s51
      %s53 = sphi 0, %s51
      %s54 = sphi 0, %s53
      %s68 = sphi 0, %s54
      %s72 = sphi 0, %s72
      %s74 = sphi 0, %s72
      %s75 = sphi 0, %s74
      %s89 = sphi 0, %s75
      %s93 = sphi 0, %s93
      %s95 = sphi 0, %s93
      %s96 = sphi 0, %s95
      %s110 = sphi 0, %s96
      %s116 = sphi 0, %s118
      %s119 = sphi 0, %s116
      %s120 = sphi 0, %s119
      %s136 = sphi 0, %s120
    $region4: #{tpu_custom_call.1} parent=1 // loop_header_branch
      %20 = sbr.rel (%p18) target = $region8
    $region5: #{tpu_custom_call.1} parent=1 // loop_body
      %s22 = ssub.s32 %s17, 1
      %s23 = ssub.s32 %s17, 2
      %s24 = sadd.s32 %s17, 1
      %s25 = ssub.s32 %s17, %s24
      %p26 = scmp.eq.s32.totalorder %s25, 0
      %s28 = sadd.s32 %s27, 1
      %s29 = scalar_select %p26, %s27, %s28
      %p32 = pneg %p26
      %p33 = scmp.eq.s32.totalorder %s17, 1
      %p34 = por %p32, %p33
      %p35 = scmp.ne.s32.totalorder %s27, %s30
      %p36 = scmp.eq.s32.totalorder %s17, 0
      %p37 = por %p35, %p36
      %p38 = scmp.ne.s32.totalorder %s27, %s30
      %p39 = scmp.eq.s32.totalorder %s22, 1
      %p40 = por %p38, %p39
      %p41 = scmp.ne.s32.totalorder %s30, %s31
      %p42 = scmp.eq.s32.totalorder %s22, 0
      %p43 = por %p41, %p42
      %p44 = scmp.ne.s32.totalorder %s30, %s31
      %p45 = scmp.eq.s32.totalorder %s23, 1
      %p46 = por %p44, %p45
      %p48 = scmp.ne.s32.totalorder %s31, %s47
      %p49 = scmp.eq.s32.totalorder %s23, 0
      %p50 = por %p48, %p49
      %s52 = sadd.s32 %s51, 1
      %p55 = scmp.eq.s32.totalorder %s17, 1
      %p56 = scmp.ne.s32.totalorder %s51, %s53
      %p57 = scmp.eq.s32.totalorder %s17, 0
      %p58 = por %p56, %p57
      %p59 = scmp.ne.s32.totalorder %s51, %s53
      %p60 = scmp.eq.s32.totalorder %s22, 1
      %p61 = por %p59, %p60
      %p62 = scmp.ne.s32.totalorder %s53, %s54
      %p63 = scmp.eq.s32.totalorder %s22, 0
      %p64 = por %p62, %p63
      %p65 = scmp.ne.s32.totalorder %s53, %s54
      %p66 = scmp.eq.s32.totalorder %s23, 1
      %p67 = por %p65, %p66
      %p69 = scmp.ne.s32.totalorder %s54, %s68
      %p70 = scmp.eq.s32.totalorder %s23, 0
      %p71 = por %p69, %p70
      %s73 = sadd.s32 %s72, 1
      %p76 = scmp.eq.s32.totalorder %s17, 1
      %p77 = scmp.ne.s32.totalorder %s72, %s74
      %p78 = scmp.eq.s32.totalorder %s17, 0
      %p79 = por %p77, %p78
      %p80 = scmp.ne.s32.totalorder %s72, %s74
      %p81 = scmp.eq.s32.totalorder %s22, 1
      %p82 = por %p80, %p81
      %p83 = scmp.ne.s32.totalorder %s74, %s75
      %p84 = scmp.eq.s32.totalorder %s22, 0
      %p85 = por %p83, %p84
      %p86 = scmp.ne.s32.totalorder %s74, %s75
      %p87 = scmp.eq.s32.totalorder %s23, 1
      %p88 = por %p86, %p87
      %p90 = scmp.ne.s32.totalorder %s75, %s89
      %p91 = scmp.eq.s32.totalorder %s23, 0
      %p92 = por %p90, %p91
      %s94 = sadd.s32 %s93, 1
      %p97 = scmp.eq.s32.totalorder %s17, 1
      %p98 = scmp.ne.s32.totalorder %s93, %s95
      %p99 = scmp.eq.s32.totalorder %s17, 0
      %p100 = por %p98, %p99
      %p101 = scmp.ne.s32.totalorder %s93, %s95
      %p102 = scmp.eq.s32.totalorder %s22, 1
      %p103 = por %p101, %p102
      %p104 = scmp.ne.s32.totalorder %s95, %s96
      %p105 = scmp.eq.s32.totalorder %s22, 0
      %p106 = por %p104, %p105
      %p107 = scmp.ne.s32.totalorder %s95, %s96
      %p108 = scmp.eq.s32.totalorder %s23, 1
      %p109 = por %p107, %p108
      %p111 = scmp.ne.s32.totalorder %s96, %s110
      %p112 = scmp.eq.s32.totalorder %s23, 0
      %p113 = por %p111, %p112
      %s114 = ssub.s32 %s17, %s24
      %p115 = scmp.eq.s32.totalorder %s114, 0
      %s117 = sadd.s32 %s116, 1
      %s118 = scalar_select %p115, %s116, %s117
      %p121 = pneg %p115
      %p122 = scmp.eq.s32.totalorder %s17, 1
      %p123 = por %p121, %p122
      %p124 = scmp.ne.s32.totalorder %s116, %s119
      %p125 = scmp.eq.s32.totalorder %s17, 0
      %p126 = por %p124, %p125
      %p127 = scmp.ne.s32.totalorder %s116, %s119
      %p128 = scmp.eq.s32.totalorder %s22, 1
      %p129 = por %p127, %p128
      %p130 = scmp.ne.s32.totalorder %s119, %s120
      %p131 = scmp.eq.s32.totalorder %s22, 0
      %p132 = por %p130, %p131
      %p133 = scmp.ne.s32.totalorder %s119, %s120
      %p134 = scmp.eq.s32.totalorder %s23, 1
      %p135 = por %p133, %p134
      %p137 = scmp.ne.s32.totalorder %s120, %s136
      %p138 = scmp.eq.s32.totalorder %s23, 0
      %p139 = por %p137, %p138
      %p140 = scmp.le.s32.totalorder 1, %s17
      %p141 = scmp.lt.s32.totalorder %s17, 3
      %p142 = pnand %p140, %p141
      %p143 = pneg %p142
      // Predicated region
      $region9: #{tpu_custom_call.1} parent=5 // pred_check
        _
      $region10: #{tpu_custom_call.1} parent=5 // pred_check_branch
        %145 = sbr.rel (%p142) target = $region12
      $region11: #{tpu_custom_call.1} parent=5 // pred_region
        %s146 = ssub.s32 %s17, 1
        // Predicated region
        $region13: #{tpu_custom_call.1} parent=11 // pred_check
          %p147 = pneg %p64
        $region14: #{tpu_custom_call.1} parent=11 // pred_check_branch
          %149 = sbr.rel (%p147) target = $region16
        $region15: #{tpu_custom_call.1} parent=11 // pred_region
          %s151 = ssub.s32 6144, 6144
          %152 = vsyncadd [#allocation8], %s151
          %s153 = sshll.u32 [#allocation7], 4
          %s154 = int_to_ptr.vmem [resolvable:$true] %s153
          %159 = dma.hbm_to_vmem [thread:$0]  %s1, 6144, %s154, [#allocation8], 128, 128, 8
        $region16: #{tpu_custom_call.1} parent=11 // pred_fallthru
          _
        // Predicated region
        $region17: #{tpu_custom_call.1} parent=11 // pred_check
          %p160 = pneg %p85
        $region18: #{tpu_custom_call.1} parent=11 // pred_check_branch
          %162 = sbr.rel (%p160) target = $region20
        $region19: #{tpu_custom_call.1} parent=11 // pred_region
          _
        $region20: #{tpu_custom_call.1} parent=11 // pred_fallthru
          _
        // Predicated region
        $region21: #{tpu_custom_call.1} parent=11 // pred_check
          %p163 = pneg %p106
        $region22: #{tpu_custom_call.1} parent=11 // pred_check_branch
          %165 = sbr.rel (%p163) target = $region24
        $region23: #{tpu_custom_call.1} parent=11 // pred_region
          _
        $region24: #{tpu_custom_call.1} parent=11 // pred_fallthru
          _
      $region12: #{tpu_custom_call.1} parent=5 // pred_fallthru
        _
      %p166 = scmp.lt.s32.totalorder %s17, 2
      // Predicated region
      $region25: #{tpu_custom_call.1} parent=5 // pred_check
        %p167 = pneg %p166
      $region26: #{tpu_custom_call.1} parent=5 // pred_check_branch
        %169 = sbr.rel (%p167) target = $region28
      $region27: #{tpu_custom_call.1} parent=5 // pred_region
        // Predicated region
        $region29: #{tpu_custom_call.1} parent=27 // pred_check
          %p170 = pneg %p37
        $region30: #{tpu_custom_call.1} parent=27 // pred_check_branch
          %172 = sbr.rel (%p170) target = $region32
        $region31: #{tpu_custom_call.1} parent=27 // pred_region
          %s173 = sand.u32 %s27, 1
          %s174 = scalar_lea.sflag [#allocation5], %s173
          %s175 = sand.u32 %s27, 1
          %s176 = smul.addr %s175, 32
          %s177 = scalar_lea.vmem [#allocation4], %s176
          %s178 = smul.u32 4, %s17
          %s180 = ssub.s32 512, 512
          %181 = vsyncadd %s174, %s180
          %s182 = smul.addr %s178, 128
          %s183 = scalar_lea.hbm %s0, %s182
          %s184 = sshll.u32 %s177, 4
          %s185 = int_to_ptr.vmem [resolvable:$true] %s184
          %190 = dma.hbm_to_vmem [thread:$0]  %s183, 512, %s185, %s174, 128, 128, 8
        $region32: #{tpu_custom_call.1} parent=27 // pred_fallthru
          _
      $region28: #{tpu_custom_call.1} parent=5 // pred_fallthru
        _
      %p191 = scmp.le.s32.totalorder 1, %s17
      %p192 = scmp.lt.s32.totalorder %s17, 3
      %p193 = pnand %p191, %p192
      %p194 = pneg %p193
      // Predicated region
      $region33: #{tpu_custom_call.1} parent=5 // pred_check
        _
      $region34: #{tpu_custom_call.1} parent=5 // pred_check_branch
        %196 = sbr.rel (%p193) target = $region36
      $region35: #{tpu_custom_call.1} parent=5 // pred_region
        %s197 = ssub.s32 %s17, 1
        %s198 = sand.u32 %s30, 1
        %s199 = scalar_lea.sflag [#allocation5], %s198
        %s200 = sand.u32 %s30, 1
        %s201 = smul.addr %s200, 32
        %s202 = scalar_lea.vmem [#allocation4], %s201
        // Predicated region
        $region37: #{tpu_custom_call.1} parent=35 // pred_check
          %p203 = pneg %p43
        $region38: #{tpu_custom_call.1} parent=35 // pred_check_branch
          %205 = sbr.rel (%p203) target = $region40
        $region39: #{tpu_custom_call.1} parent=35 // pred_region
          %206 = dma.done %s199, 512
        $region40: #{tpu_custom_call.1} parent=35 // pred_fallthru
          _
        // Predicated region
        $region41: #{tpu_custom_call.1} parent=35 // pred_check
          %p207 = pneg %p64
        $region42: #{tpu_custom_call.1} parent=35 // pred_check_branch
          %209 = sbr.rel (%p207) target = $region44
        $region43: #{tpu_custom_call.1} parent=35 // pred_region
          %210 = dma.done [#allocation8], 6144
        $region44: #{tpu_custom_call.1} parent=35 // pred_fallthru
          _
        %s211 = sand.u32 %s30, 1
        %s212 = scalar_lea.sflag [#allocation5], %s211
        %s213 = sand.u32 %s30, 1
        %s214 = smul.addr %s213, 32
        %s215 = scalar_lea.vmem [#allocation4], %s214
        %p216 = pneg %p43
        %p217 = pneg %p40
        %p218 = pneg %p64
        %p219 = pneg %p61
        %p220 = pneg %p85
        %p221 = pneg %p82
        %p222 = pneg %p106
        %p223 = pneg %p103
        %p224 = pneg %p132
        %p225 = pneg %p129
        %s226 = sand.u32 %s119, 1
        %s227 = scalar_lea.sflag [#allocation6], %s226
        %s228 = sand.u32 %s119, 1
        %s229 = smul.addr %s228, 256
        %s230 = scalar_lea.vmem [#allocation9], %s229
        %s231 = smul.u32 4, %s22
        %s232 = smul.u32 8, %s22
        %v233 = vld [vmem:[%s202] sm:$0xf]
        %234 = vst [vmem:[#allocation3] sm:$0xf] %v233
        %v235 = vld [vmem:[%s202 + $0x4] sm:$0xf]
        %236 = vst [vmem:[#allocation3 + $0x8] sm:$0xf] %v235
        %v237 = vld [vmem:[%s202 + $0x8] sm:$0xf]
        %238 = vst [vmem:[#allocation3 + $0x10] sm:$0xf] %v237
        %v239 = vld [vmem:[%s202 + $0xc] sm:$0xf]
        %240 = vst [vmem:[#allocation3 + $0x18] sm:$0xf] %v239
        %v241 = vld [vmem:[%s202 + $0x10] sm:$0xf]
        %242 = vst [vmem:[#allocation3 + $0x20] sm:$0xf] %v241
        %v243 = vld [vmem:[%s202 + $0x14] sm:$0xf]
        %244 = vst [vmem:[#allocation3 + $0x28] sm:$0xf] %v243
        %v245 = vld [vmem:[%s202 + $0x18] sm:$0xf]
        %246 = vst [vmem:[#allocation3 + $0x30] sm:$0xf] %v245
        %v247 = vld [vmem:[%s202 + $0x1c] sm:$0xf]
        %248 = vst [vmem:[#allocation3 + $0x38] sm:$0xf] %v247
        %v249 = vld [vmem:[#allocation7] sm:$0xff]
        %v250 = vld [vmem:[#allocation7 + $0x8] sm:$0xff]
        %v251 = vld [vmem:[#allocation7 + $0x10] sm:$0xff]
        %v252 = vld [vmem:[#allocation7 + $0x18] sm:$0xff]
        %v253 = vld [vmem:[#allocation7 + $0x20] sm:$0xff]
        %v254 = vld [vmem:[#allocation7 + $0x28] sm:$0xff]
        %v255 = vld [vmem:[#allocation7 + $0x30] sm:$0xff]
        %v256 = vld [vmem:[#allocation7 + $0x38] sm:$0xff]
        %v257 = vld [vmem:[#allocation7 + $0x40] sm:$0xff]
        %v258 = vld [vmem:[#allocation7 + $0x48] sm:$0xff]
        %v259 = vld [vmem:[#allocation7 + $0x50] sm:$0xff]
        %v260 = vld [vmem:[#allocation7 + $0x58] sm:$0xff]
        %v261 = vld [vmem:[#allocation7 + $0x60] sm:$0xff]
        %v262 = vld [vmem:[#allocation7 + $0x68] sm:$0xff]
        %v263 = vld [vmem:[#allocation7 + $0x70] sm:$0xff]
        %v264 = vld [vmem:[#allocation7 + $0x78] sm:$0xff]
        %v265 = vld [vmem:[%s202] sm:$0xff]
        %v266 = vld [vmem:[%s202 + $0x8] sm:$0xff]
        %v267 = vld [vmem:[%s202 + $0x10] sm:$0xff]
        %v268 = vld [vmem:[%s202 + $0x18] sm:$0xff]
        %269 = vmatprep.subr.mxu0 0.0
        %270 = vmatpush1.msra.mxu0 %v249
        %271 = vmatprep.subr.mxu0 0.0
        %272 = vmatpush1.msra.mxu0 %v250
        %273 = vmatprep.subr.mxu0 0.0
        %274 = vmatpush1.msra.mxu0 %v251
        %275 = vmatprep.subr.mxu0 0.0
        %276 = vmatpush1.msra.mxu0 %v252
        %277 = vmatprep.subr.mxu0 0.0
        %278 = vmatpush1.msra.mxu0 %v253
        %279 = vmatprep.subr.mxu0 0.0
        %280 = vmatpush1.msra.mxu0 %v254
        %281 = vmatprep.subr.mxu0 0.0
        %282 = vmatpush1.msra.mxu0 %v255
        %283 = vmatprep.subr.mxu0 0.0
        %284 = vmatpush1.msra.mxu0 %v256
        %285 = vmatprep.subr.mxu0 0.0
        %286 = vmatpush1.msra.mxu0 %v257
        %287 = vmatprep.subr.mxu0 0.0
        %288 = vmatpush1.msra.mxu0 %v258
        %289 = vmatprep.subr.mxu0 0.0
        %290 = vmatpush1.msra.mxu0 %v259
        %291 = vmatprep.subr.mxu0 0.0
        %292 = vmatpush1.msra.mxu0 %v260
        %293 = vmatprep.subr.mxu0 0.0
        %294 = vmatpush1.msra.mxu0 %v261
        %295 = vmatprep.subr.mxu0 0.0
        %296 = vmatpush1.msra.mxu0 %v262
        %297 = vmatprep.subr.mxu0 0.0
        %298 = vmatpush1.msra.mxu0 %v263
        %299 = vmatprep.subr.mxu0 0.0
        %300 = vmatpush1.msra.mxu0 %v264
        %301 = vmatprep.subr.mxu0 0.0
        %302 = vmatpush1.msra.mxu0 0.0
        %303 = vmatprep.subr.mxu0 0.0
        %304 = vmatpush1.msra.mxu0 0.0
        %305 = vmatprep.subr.mxu0 0.0
        %306 = vmatpush1.msra.mxu0 0.0
        %307 = vmatprep.subr.mxu0 0.0
        %308 = vmatpush1.msra.mxu0 0.0
        %309 = vmatprep.subr.mxu0 0.0
        %310 = vmatpush1.msra.mxu0 0.0
        %311 = vmatprep.subr.mxu0 0.0
        %312 = vmatpush1.msra.mxu0 0.0
        %313 = vmatprep.subr.mxu0 0.0
        %314 = vmatpush1.msra.mxu0 0.0
        %315 = vmatprep.subr.mxu0 0.0
        %316 = vmatpush1.msra.mxu0 0.0
        %317 = vmatprep.subr.mxu0 0.0
        %318 = vmatpush1.msra.mxu0 0.0
        %319 = vmatprep.subr.mxu0 0.0
        %320 = vmatpush1.msra.mxu0 0.0
        %321 = vmatprep.subr.mxu0 0.0
        %322 = vmatpush1.msra.mxu0 0.0
        %323 = vmatprep.subr.mxu0 0.0
        %324 = vmatpush1.msra.mxu0 0.0
        %325 = vmatprep.subr.mxu0 0.0
        %326 = vmatpush1.msra.mxu0 0.0
        %327 = vmatprep.subr.mxu0 0.0
        %328 = vmatpush1.msra.mxu0 0.0
        %329 = vmatprep.subr.mxu0 0.0
        %330 = vmatpush1.msra.mxu0 0.0
        %331 = vmatprep.subr.mxu0 0.0
        %332 = vmatpush1.msra.mxu0 0.0
        %333 = vmatprep.mubr.f32.mxu0 0.0
        %334 = vmatmul.mubr.f32.gmra.mrb[0].mxu0 %v265
        %v335 = vpop.f32.mrb[0].mxu0
        %v336 = vadd.f32 0.0, %v335
        %v337 = vpop.f32.mrb[0].mxu0
        %338 = vmatprep.mubr.f32.mxu0 0.0
        %339 = vmatmul.mubr.f32.gmra.mrb[0].mxu0 %v266
        %v340 = vpop.f32.mrb[0].mxu0
        %v341 = vadd.f32 0.0, %v340
        %v342 = vpop.f32.mrb[0].mxu0
        %343 = vmatprep.mubr.f32.mxu0 0.0
        %344 = vmatmul.mubr.f32.gmra.mrb[0].mxu0 %v267
        %v345 = vpop.f32.mrb[0].mxu0
        %v346 = vadd.f32 0.0, %v345
        %v347 = vpop.f32.mrb[0].mxu0
        %348 = vmatprep.mubr.f32.mxu0 0.0
        %349 = vmatmul.mubr.f32.gmra.mrb[0].mxu0 %v268
        %v350 = vpop.f32.mrb[0].mxu0
        %v351 = vadd.f32 0.0, %v350
        %v352 = vpop.f32.mrb[0].mxu0
        %353 = vdwg.mxu0
        %354 = vst [vmem:[#allocation2] sm:$0xff] %v336
        %355 = vst [vmem:[#allocation2 + $0x8] sm:$0xff] %v341
        %356 = vst [vmem:[#allocation2 + $0x10] sm:$0xff] %v346
        %357 = vst [vmem:[#allocation2 + $0x18] sm:$0xff] %v351
        %v358 = vld [vmem:[#allocation2] sm:$0xf]
        %v360 = vrot.slane %v358, 4
        %362 = vst [vmem:[#allocation3] sm:$0xf0] %v360
        %v363 = vld [vmem:[#allocation2 + $0x4] sm:$0xf]
        %v365 = vrot.slane %v363, 4
        %367 = vst [vmem:[#allocation3 + $0x8] sm:$0xf0] %v365
        %v368 = vld [vmem:[#allocation2 + $0x8] sm:$0xf]
        %v370 = vrot.slane %v368, 4
        %372 = vst [vmem:[#allocation3 + $0x10] sm:$0xf0] %v370
        %v373 = vld [vmem:[#allocation2 + $0xc] sm:$0xf]
        %v375 = vrot.slane %v373, 4
        %377 = vst [vmem:[#allocation3 + $0x18] sm:$0xf0] %v375
        %v378 = vld [vmem:[#allocation2 + $0x10] sm:$0xf]
        %v380 = vrot.slane %v378, 4
        %382 = vst [vmem:[#allocation3 + $0x20] sm:$0xf0] %v380
        %v383 = vld [vmem:[#allocation2 + $0x14] sm:$0xf]
        %v385 = vrot.slane %v383, 4
        %387 = vst [vmem:[#allocation3 + $0x28] sm:$0xf0] %v385
        %v388 = vld [vmem:[#allocation2 + $0x18] sm:$0xf]
        %v390 = vrot.slane %v388, 4
        %392 = vst [vmem:[#allocation3 + $0x30] sm:$0xf0] %v390
        %v393 = vld [vmem:[#allocation2 + $0x1c] sm:$0xf]
        %v395 = vrot.slane %v393, 4
        %397 = vst [vmem:[#allocation3 + $0x38] sm:$0xf0] %v395
        %v398 = vld [vmem:[#allocation2] sm:$0xff]
        %v399 = vld [vmem:[#allocation2 + $0x8] sm:$0xff]
        %v400 = vld [vmem:[#allocation2 + $0x10] sm:$0xff]
        %v401 = vld [vmem:[#allocation2 + $0x18] sm:$0xff]
        %402 = vmatprep.subr.mxu0 0.0
        %403 = vmatpush1.msra.mxu0 %v249
        %404 = vmatprep.subr.mxu0 0.0
        %405 = vmatpush1.msra.mxu0 %v250
        %406 = vmatprep.subr.mxu0 0.0
        %407 = vmatpush1.msra.mxu0 %v251
        %408 = vmatprep.subr.mxu0 0.0
        %409 = vmatpush1.msra.mxu0 %v252
        %410 = vmatprep.subr.mxu0 0.0
        %411 = vmatpush1.msra.mxu0 %v253
        %412 = vmatprep.subr.mxu0 0.0
        %413 = vmatpush1.msra.mxu0 %v254
        %414 = vmatprep.subr.mxu0 0.0
        %415 = vmatpush1.msra.mxu0 %v255
        %416 = vmatprep.subr.mxu0 0.0
        %417 = vmatpush1.msra.mxu0 %v256
        %418 = vmatprep.subr.mxu0 0.0
        %419 = vmatpush1.msra.mxu0 %v257
        %420 = vmatprep.subr.mxu0 0.0
        %421 = vmatpush1.msra.mxu0 %v258
        %422 = vmatprep.subr.mxu0 0.0
        %423 = vmatpush1.msra.mxu0 %v259
        %424 = vmatprep.subr.mxu0 0.0
        %425 = vmatpush1.msra.mxu0 %v260
        %426 = vmatprep.subr.mxu0 0.0
        %427 = vmatpush1.msra.mxu0 %v261
        %428 = vmatprep.subr.mxu0 0.0
        %429 = vmatpush1.msra.mxu0 %v262
        %430 = vmatprep.subr.mxu0 0.0
        %431 = vmatpush1.msra.mxu0 %v263
        %432 = vmatprep.subr.mxu0 0.0
        %433 = vmatpush1.msra.mxu0 %v264
        %434 = vmatprep.subr.mxu0 0.0
        %435 = vmatpush1.msra.mxu0 0.0
        %436 = vmatprep.subr.mxu0 0.0
        %437 = vmatpush1.msra.mxu0 0.0
        %438 = vmatprep.subr.mxu0 0.0
        %439 = vmatpush1.msra.mxu0 0.0
        %440 = vmatprep.subr.mxu0 0.0
        %441 = vmatpush1.msra.mxu0 0.0
        %442 = vmatprep.subr.mxu0 0.0
        %443 = vmatpush1.msra.mxu0 0.0
        %444 = vmatprep.subr.mxu0 0.0
        %445 = vmatpush1.msra.mxu0 0.0
        %446 = vmatprep.subr.mxu0 0.0
        %447 = vmatpush1.msra.mxu0 0.0
        %448 = vmatprep.subr.mxu0 0.0
        %449 = vmatpush1.msra.mxu0 0.0
        %450 = vmatprep.subr.mxu0 0.0
        %451 = vmatpush1.msra.mxu0 0.0
        %452 = vmatprep.subr.mxu0 0.0
        %453 = vmatpush1.msra.mxu0 0.0
        %454 = vmatprep.subr.mxu0 0.0
        %455 = vmatpush1.msra.mxu0 0.0
        %456 = vmatprep.subr.mxu0 0.0
        %457 = vmatpush1.msra.mxu0 0.0
        %458 = vmatprep.subr.mxu0 0.0
        %459 = vmatpush1.msra.mxu0 0.0
        %460 = vmatprep.subr.mxu0 0.0
        %461 = vmatpush1.msra.mxu0 0.0
        %462 = vmatprep.subr.mxu0 0.0
        %463 = vmatpush1.msra.mxu0 0.0
        %464 = vmatprep.subr.mxu0 0.0
        %465 = vmatpush1.msra.mxu0 0.0
        %466 = vmatprep.mubr.f32.mxu0 0.0
        %467 = vmatmul.mubr.f32.gmra.mrb[0].mxu0 %v398
        %v468 = vpop.f32.mrb[0].mxu0
        %v469 = vadd.f32 0.0, %v468
        %v470 = vpop.f32.mrb[0].mxu0
        %471 = vmatprep.mubr.f32.mxu0 0.0
        %472 = vmatmul.mubr.f32.gmra.mrb[0].mxu0 %v399
        %v473 = vpop.f32.mrb[0].mxu0
        %v474 = vadd.f32 0.0, %v473
        %v475 = vpop.f32.mrb[0].mxu0
        %476 = vmatprep.mubr.f32.mxu0 0.0
        %477 = vmatmul.mubr.f32.gmra.mrb[0].mxu0 %v400
        %v478 = vpop.f32.mrb[0].mxu0
        %v479 = vadd.f32 0.0, %v478
        %v480 = vpop.f32.mrb[0].mxu0
        %481 = vmatprep.mubr.f32.mxu0 0.0
        %482 = vmatmul.mubr.f32.gmra.mrb[0].mxu0 %v401
        %v483 = vpop.f32.mrb[0].mxu0
        %v484 = vadd.f32 0.0, %v483
        %v485 = vpop.f32.mrb[0].mxu0
        %486 = vdwg.mxu0
        %487 = vst [vmem:[#allocation2] sm:$0xff] %v469
        %488 = vst [vmem:[#allocation2 + $0x8] sm:$0xff] %v474
        %489 = vst [vmem:[#allocation2 + $0x10] sm:$0xff] %v479
        %490 = vst [vmem:[#allocation2 + $0x18] sm:$0xff] %v484
        %v491 = vld [vmem:[#allocation2] sm:$0xf]
        %492 = vst [vmem:[#allocation3 + $0x40] sm:$0xf] %v491
        %v493 = vld [vmem:[#allocation2 + $0x4] sm:$0xf]
        %494 = vst [vmem:[#allocation3 + $0x48] sm:$0xf] %v493
        %v495 = vld [vmem:[#allocation2 + $0x8] sm:$0xf]
        %496 = vst [vmem:[#allocation3 + $0x50] sm:$0xf] %v495
        %v497 = vld [vmem:[#allocation2 + $0xc] sm:$0xf]
        %498 = vst [vmem:[#allocation3 + $0x58] sm:$0xf] %v497
        %v499 = vld [vmem:[#allocation2 + $0x10] sm:$0xf]
        %500 = vst [vmem:[#allocation3 + $0x60] sm:$0xf] %v499
        %v501 = vld [vmem:[#allocation2 + $0x14] sm:$0xf]
        %502 = vst [vmem:[#allocation3 + $0x68] sm:$0xf] %v501
        %v503 = vld [vmem:[#allocation2 + $0x18] sm:$0xf]
        %504 = vst [vmem:[#allocation3 + $0x70] sm:$0xf] %v503
        %v505 = vld [vmem:[#allocation2 + $0x1c] sm:$0xf]
        %506 = vst [vmem:[#allocation3 + $0x78] sm:$0xf] %v505
        %s507 = scalar_lea.vmem [#allocation7], 128
        %v508 = vld [vmem:[%s507] sm:$0xff]
        %v509 = vld [vmem:[%s507 + $0x8] sm:$0xff]
        %v510 = vld [vmem:[%s507 + $0x10] sm:$0xff]
        %v511 = vld [vmem:[%s507 + $0x18] sm:$0xff]
        %v512 = vld [vmem:[%s507 + $0x20] sm:$0xff]
        %v513 = vld [vmem:[%s507 + $0x28] sm:$0xff]
        %v514 = vld [vmem:[%s507 + $0x30] sm:$0xff]
        %v515 = vld [vmem:[%s507 + $0x38] sm:$0xff]
        %v516 = vld [vmem:[%s507 + $0x40] sm:$0xff]
        %v517 = vld [vmem:[%s507 + $0x48] sm:$0xff]
        %v518 = vld [vmem:[%s507 + $0x50] sm:$0xff]
        %v519 = vld [vmem:[%s507 + $0x58] sm:$0xff]
        %v520 = vld [vmem:[%s507 + $0x60] sm:$0xff]
        %v521 = vld [vmem:[%s507 + $0x68] sm:$0xff]
        %v522 = vld [vmem:[%s507 + $0x70] sm:$0xff]
        %v523 = vld [vmem:[%s507 + $0x78] sm:$0xff]
        %v524 = vld [vmem:[%s202] sm:$0xff]
        %v525 = vld [vmem:[%s202 + $0x8] sm:$0xff]
        %v526 = vld [vmem:[%s202 + $0x10] sm:$0xff]
        %v527 = vld [vmem:[%s202 + $0x18] sm:$0xff]
        %528 = vmatprep.subr.mxu0 0.0
        %529 = vmatpush1.msra.mxu0 %v508
        %530 = vmatprep.subr.mxu0 0.0
        %531 = vmatpush1.msra.mxu0 %v509
        %532 = vmatprep.subr.mxu0 0.0
        %533 = vmatpush1.msra.mxu0 %v510
        %534 = vmatprep.subr.mxu0 0.0
        %535 = vmatpush1.msra.mxu0 %v511
        %536 = vmatprep.subr.mxu0 0.0
        %537 = vmatpush1.msra.mxu0 %v512
        %538 = vmatprep.subr.mxu0 0.0
        %539 = vmatpush1.msra.mxu0 %v513
        %540 = vmatprep.subr.mxu0 0.0
        %541 = vmatpush1.msra.mxu0 %v514
        %542 = vmatprep.subr.mxu0 0.0
        %543 = vmatpush1.msra.mxu0 %v515
        %544 = vmatprep.subr.mxu0 0.0
        %545 = vmatpush1.msra.mxu0 %v516
        %546 = vmatprep.subr.mxu0 0.0
        %547 = vmatpush1.msra.mxu0 %v517
        %548 = vmatprep.subr.mxu0 0.0
        %549 = vmatpush1.msra.mxu0 %v518
        %550 = vmatprep.subr.mxu0 0.0
        %551 = vmatpush1.msra.mxu0 %v519
        %552 = vmatprep.subr.mxu0 0.0
        %553 = vmatpush1.msra.mxu0 %v520
        %554 = vmatprep.subr.mxu0 0.0
        %555 = vmatpush1.msra.mxu0 %v521
        %556 = vmatprep.subr.mxu0 0.0
        %557 = vmatpush1.msra.mxu0 %v522
        %558 = vmatprep.subr.mxu0 0.0
        %559 = vmatpush1.msra.mxu0 %v523
        %560 = vmatprep.subr.mxu0 0.0
        %561 = vmatpush1.msra.mxu0 0.0
        %562 = vmatprep.subr.mxu0 0.0
        %563 = vmatpush1.msra.mxu0 0.0
        %564 = vmatprep.subr.mxu0 0.0
        %565 = vmatpush1.msra.mxu0 0.0
        %566 = vmatprep.subr.mxu0 0.0
        %567 = vmatpush1.msra.mxu0 0.0
        %568 = vmatprep.subr.mxu0 0.0
        %569 = vmatpush1.msra.mxu0 0.0
        %570 = vmatprep.subr.mxu0 0.0
        %571 = vmatpush1.msra.mxu0 0.0
        %572 = vmatprep.subr.mxu0 0.0
        %573 = vmatpush1.msra.mxu0 0.0
        %574 = vmatprep.subr.mxu0 0.0
        %575 = vmatpush1.msra.mxu0 0.0
        %576 = vmatprep.subr.mxu0 0.0
        %577 = vmatpush1.msra.mxu0 0.0
        %578 = vmatprep.subr.mxu0 0.0
        %579 = vmatpush1.msra.mxu0 0.0
        %580 = vmatprep.subr.mxu0 0.0
        %581 = vmatpush1.msra.mxu0 0.0
        %582 = vmatprep.subr.mxu0 0.0
        %583 = vmatpush1.msra.mxu0 0.0
        %584 = vmatprep.subr.mxu0 0.0
        %585 = vmatpush1.msra.mxu0 0.0
        %586 = vmatprep.subr.mxu0 0.0
        %587 = vmatpush1.msra.mxu0 0.0
        %588 = vmatprep.subr.mxu0 0.0
        %589 = vmatpush1.msra.mxu0 0.0
        %590 = vmatprep.subr.mxu0 0.0
        %591 = vmatpush1.msra.mxu0 0.0
        %592 = vmatprep.mubr.f32.mxu0 0.0
        %593 = vmatmul.mubr.f32.gmra.mrb[0].mxu0 %v524
        %v594 = vpop.f32.mrb[0].mxu0
        %v595 = vadd.f32 0.0, %v594
        %v596 = vpop.f32.mrb[0].mxu0
        %597 = vmatprep.mubr.f32.mxu0 0.0
        %598 = vmatmul.mubr.f32.gmra.mrb[0].mxu0 %v525
        %v599 = vpop.f32.mrb[0].mxu0
        %v600 = vadd.f32 0.0, %v599
        %v601 = vpop.f32.mrb[0].mxu0
        %602 = vmatprep.mubr.f32.mxu0 0.0
        %603 = vmatmul.mubr.f32.gmra.mrb[0].mxu0 %v526
        %v604 = vpop.f32.mrb[0].mxu0
        %v605 = vadd.f32 0.0, %v604
        %v606 = vpop.f32.mrb[0].mxu0
        %607 = vmatprep.mubr.f32.mxu0 0.0
        %608 = vmatmul.mubr.f32.gmra.mrb[0].mxu0 %v527
        %v609 = vpop.f32.mrb[0].mxu0
        %v610 = vadd.f32 0.0, %v609
        %v611 = vpop.f32.mrb[0].mxu0
        %612 = vdwg.mxu0
        %613 = vst [vmem:[#allocation2] sm:$0xff] %v595
        %614 = vst [vmem:[#allocation2 + $0x8] sm:$0xff] %v600
        %615 = vst [vmem:[#allocation2 + $0x10] sm:$0xff] %v605
        %616 = vst [vmem:[#allocation2 + $0x18] sm:$0xff] %v610
        %v617 = vld [vmem:[#allocation2] sm:$0xf]
        %v619 = vrot.slane %v617, 4
        %621 = vst [vmem:[#allocation3 + $0x40] sm:$0xf0] %v619
        %v622 = vld [vmem:[#allocation2 + $0x4] sm:$0xf]
        %v624 = vrot.slane %v622, 4
        %626 = vst [vmem:[#allocation3 + $0x48] sm:$0xf0] %v624
        %v627 = vld [vmem:[#allocation2 + $0x8] sm:$0xf]
        %v629 = vrot.slane %v627, 4
        %631 = vst [vmem:[#allocation3 + $0x50] sm:$0xf0] %v629
        %v632 = vld [vmem:[#allocation2 + $0xc] sm:$0xf]
        %v634 = vrot.slane %v632, 4
        %636 = vst [vmem:[#allocation3 + $0x58] sm:$0xf0] %v634
        %v637 = vld [vmem:[#allocation2 + $0x10] sm:$0xf]
        %v639 = vrot.slane %v637, 4
        %641 = vst [vmem:[#allocation3 + $0x60] sm:$0xf0] %v639
        %v642 = vld [vmem:[#allocation2 + $0x14] sm:$0xf]
        %v644 = vrot.slane %v642, 4
        %646 = vst [vmem:[#allocation3 + $0x68] sm:$0xf0] %v644
        %v647 = vld [vmem:[#allocation2 + $0x18] sm:$0xf]
        %v649 = vrot.slane %v647, 4
        %651 = vst [vmem:[#allocation3 + $0x70] sm:$0xf0] %v649
        %v652 = vld [vmem:[#allocation2 + $0x1c] sm:$0xf]
        %v654 = vrot.slane %v652, 4
        %656 = vst [vmem:[#allocation3 + $0x78] sm:$0xf0] %v654
        %v657 = vld [vmem:[#allocation2] sm:$0xff]
        %v658 = vld [vmem:[#allocation2 + $0x8] sm:$0xff]
        %v659 = vld [vmem:[#allocation2 + $0x10] sm:$0xff]
        %v660 = vld [vmem:[#allocation2 + $0x18] sm:$0xff]
        %661 = vmatprep.subr.mxu0 0.0
        %662 = vmatpush1.msra.mxu0 %v508
        %663 = vmatprep.subr.mxu0 0.0
        %664 = vmatpush1.msra.mxu0 %v509
        %665 = vmatprep.subr.mxu0 0.0
        %666 = vmatpush1.msra.mxu0 %v510
        %667 = vmatprep.subr.mxu0 0.0
        %668 = vmatpush1.msra.mxu0 %v511
        %669 = vmatprep.subr.mxu0 0.0
        %670 = vmatpush1.msra.mxu0 %v512
        %671 = vmatprep.subr.mxu0 0.0
        %672 = vmatpush1.msra.mxu0 %v513
        %673 = vmatprep.subr.mxu0 0.0
        %674 = vmatpush1.msra.mxu0 %v514
        %675 = vmatprep.subr.mxu0 0.0
        %676 = vmatpush1.msra.mxu0 %v515
        %677 = vmatprep.subr.mxu0 0.0
        %678 = vmatpush1.msra.mxu0 %v516
        %679 = vmatprep.subr.mxu0 0.0
        %680 = vmatpush1.msra.mxu0 %v517
        %681 = vmatprep.subr.mxu0 0.0
        %682 = vmatpush1.msra.mxu0 %v518
        %683 = vmatprep.subr.mxu0 0.0
        %684 = vmatpush1.msra.mxu0 %v519
        %685 = vmatprep.subr.mxu0 0.0
        %686 = vmatpush1.msra.mxu0 %v520
        %687 = vmatprep.subr.mxu0 0.0
        %688 = vmatpush1.msra.mxu0 %v521
        %689 = vmatprep.subr.mxu0 0.0
        %690 = vmatpush1.msra.mxu0 %v522
        %691 = vmatprep.subr.mxu0 0.0
        %692 = vmatpush1.msra.mxu0 %v523
        %693 = vmatprep.subr.mxu0 0.0
        %694 = vmatpush1.msra.mxu0 0.0
        %695 = vmatprep.subr.mxu0 0.0
        %696 = vmatpush1.msra.mxu0 0.0
        %697 = vmatprep.subr.mxu0 0.0
        %698 = vmatpush1.msra.mxu0 0.0
        %699 = vmatprep.subr.mxu0 0.0
        %700 = vmatpush1.msra.mxu0 0.0
        %701 = vmatprep.subr.mxu0 0.0
        %702 = vmatpush1.msra.mxu0 0.0
        %703 = vmatprep.subr.mxu0 0.0
        %704 = vmatpush1.msra.mxu0 0.0
        %705 = vmatprep.subr.mxu0 0.0
        %706 = vmatpush1.msra.mxu0 0.0
        %707 = vmatprep.subr.mxu0 0.0
        %708 = vmatpush1.msra.mxu0 0.0
        %709 = vmatprep.subr.mxu0 0.0
        %710 = vmatpush1.msra.mxu0 0.0
        %711 = vmatprep.subr.mxu0 0.0
        %712 = vmatpush1.msra.mxu0 0.0
        %713 = vmatprep.subr.mxu0 0.0
        %714 = vmatpush1.msra.mxu0 0.0
        %715 = vmatprep.subr.mxu0 0.0
        %716 = vmatpush1.msra.mxu0 0.0
        %717 = vmatprep.subr.mxu0 0.0
        %718 = vmatpush1.msra.mxu0 0.0
        %719 = vmatprep.subr.mxu0 0.0
        %720 = vmatpush1.msra.mxu0 0.0
        %721 = vmatprep.subr.mxu0 0.0
        %722 = vmatpush1.msra.mxu0 0.0
        %723 = vmatprep.subr.mxu0 0.0
        %724 = vmatpush1.msra.mxu0 0.0
        %725 = vmatprep.mubr.f32.mxu0 0.0
        %726 = vmatmul.mubr.f32.gmra.mrb[0].mxu0 %v657
        %v727 = vpop.f32.mrb[0].mxu0
        %v728 = vadd.f32 0.0, %v727
        %v729 = vpop.f32.mrb[0].mxu0
        %730 = vmatprep.mubr.f32.mxu0 0.0
        %731 = vmatmul.mubr.f32.gmra.mrb[0].mxu0 %v658
        %v732 = vpop.f32.mrb[0].mxu0
        %v733 = vadd.f32 0.0, %v732
        %v734 = vpop.f32.mrb[0].mxu0
        %735 = vmatprep.mubr.f32.mxu0 0.0
        %736 = vmatmul.mubr.f32.gmra.mrb[0].mxu0 %v659
        %v737 = vpop.f32.mrb[0].mxu0
        %v738 = vadd.f32 0.0, %v737
        %v739 = vpop.f32.mrb[0].mxu0
        %740 = vmatprep.mubr.f32.mxu0 0.0
        %741 = vmatmul.mubr.f32.gmra.mrb[0].mxu0 %v660
        %v742 = vpop.f32.mrb[0].mxu0
        %v743 = vadd.f32 0.0, %v742
        %v744 = vpop.f32.mrb[0].mxu0
        %745 = vdwg.mxu0
        %746 = vst [vmem:[#allocation2] sm:$0xff] %v728
        %747 = vst [vmem:[#allocation2 + $0x8] sm:$0xff] %v733
        %748 = vst [vmem:[#allocation2 + $0x10] sm:$0xff] %v738
        %749 = vst [vmem:[#allocation2 + $0x18] sm:$0xff] %v743
        %v750 = vld [vmem:[#allocation2] sm:$0xf]
        %751 = vst [vmem:[#allocation3 + $0x80] sm:$0xf] %v750
        %v752 = vld [vmem:[#allocation2 + $0x4] sm:$0xf]
        %753 = vst [vmem:[#allocation3 + $0x88] sm:$0xf] %v752
        %v754 = vld [vmem:[#allocation2 + $0x8] sm:$0xf]
        %755 = vst [vmem:[#allocation3 + $0x90] sm:$0xf] %v754
        %v756 = vld [vmem:[#allocation2 + $0xc] sm:$0xf]
        %757 = vst [vmem:[#allocation3 + $0x98] sm:$0xf] %v756
        %v758 = vld [vmem:[#allocation2 + $0x10] sm:$0xf]
        %759 = vst [vmem:[#allocation3 + $0xa0] sm:$0xf] %v758
        %v760 = vld [vmem:[#allocation2 + $0x14] sm:$0xf]
        %761 = vst [vmem:[#allocation3 + $0xa8] sm:$0xf] %v760
        %v762 = vld [vmem:[#allocation2 + $0x18] sm:$0xf]
        %763 = vst [vmem:[#allocation3 + $0xb0] sm:$0xf] %v762
        %v764 = vld [vmem:[#allocation2 + $0x1c] sm:$0xf]
        %765 = vst [vmem:[#allocation3 + $0xb8] sm:$0xf] %v764
        %s766 = scalar_lea.vmem [#allocation7], 256
        %v767 = vld [vmem:[%s766] sm:$0xff]
        %v768 = vld [vmem:[%s766 + $0x8] sm:$0xff]
        %v769 = vld [vmem:[%s766 + $0x10] sm:$0xff]
        %v770 = vld [vmem:[%s766 + $0x18] sm:$0xff]
        %v771 = vld [vmem:[%s766 + $0x20] sm:$0xff]
        %v772 = vld [vmem:[%s766 + $0x28] sm:$0xff]
        %v773 = vld [vmem:[%s766 + $0x30] sm:$0xff]
        %v774 = vld [vmem:[%s766 + $0x38] sm:$0xff]
        %v775 = vld [vmem:[%s766 + $0x40] sm:$0xff]
        %v776 = vld [vmem:[%s766 + $0x48] sm:$0xff]
        %v777 = vld [vmem:[%s766 + $0x50] sm:$0xff]
        %v778 = vld [vmem:[%s766 + $0x58] sm:$0xff]
        %v779 = vld [vmem:[%s766 + $0x60] sm:$0xff]
        %v780 = vld [vmem:[%s766 + $0x68] sm:$0xff]
        %v781 = vld [vmem:[%s766 + $0x70] sm:$0xff]
        %v782 = vld [vmem:[%s766 + $0x78] sm:$0xff]
        %v783 = vld [vmem:[%s202] sm:$0xff]
        %v784 = vld [vmem:[%s202 + $0x8] sm:$0xff]
        %v785 = vld [vmem:[%s202 + $0x10] sm:$0xff]
        %v786 = vld [vmem:[%s202 + $0x18] sm:$0xff]
        %787 = vmatprep.subr.mxu0 0.0
        %788 = vmatpush1.msra.mxu0 %v767
        %789 = vmatprep.subr.mxu0 0.0
        %790 = vmatpush1.msra.mxu0 %v768
        %791 = vmatprep.subr.mxu0 0.0
        %792 = vmatpush1.msra.mxu0 %v769
        %793 = vmatprep.subr.mxu0 0.0
        %794 = vmatpush1.msra.mxu0 %v770
        %795 = vmatprep.subr.mxu0 0.0
        %796 = vmatpush1.msra.mxu0 %v771
        %797 = vmatprep.subr.mxu0 0.0
        %798 = vmatpush1.msra.mxu0 %v772
        %799 = vmatprep.subr.mxu0 0.0
        %800 = vmatpush1.msra.mxu0 %v773
        %801 = vmatprep.subr.mxu0 0.0
        %802 = vmatpush1.msra.mxu0 %v774
        %803 = vmatprep.subr.mxu0 0.0
        %804 = vmatpush1.msra.mxu0 %v775
        %805 = vmatprep.subr.mxu0 0.0
        %806 = vmatpush1.msra.mxu0 %v776
        %807 = vmatprep.subr.mxu0 0.0
        %808 = vmatpush1.msra.mxu0 %v777
        %809 = vmatprep.subr.mxu0 0.0
        %810 = vmatpush1.msra.mxu0 %v778
        %811 = vmatprep.subr.mxu0 0.0
        %812 = vmatpush1.msra.mxu0 %v779
        %813 = vmatprep.subr.mxu0 0.0
        %814 = vmatpush1.msra.mxu0 %v780
        %815 = vmatprep.subr.mxu0 0.0
        %816 = vmatpush1.msra.mxu0 %v781
        %817 = vmatprep.subr.mxu0 0.0
        %818 = vmatpush1.msra.mxu0 %v782
        %819 = vmatprep.subr.mxu0 0.0
        %820 = vmatpush1.msra.mxu0 0.0
        %821 = vmatprep.subr.mxu0 0.0
        %822 = vmatpush1.msra.mxu0 0.0
        %823 = vmatprep.subr.mxu0 0.0
        %824 = vmatpush1.msra.mxu0 0.0
        %825 = vmatprep.subr.mxu0 0.0
        %826 = vmatpush1.msra.mxu0 0.0
        %827 = vmatprep.subr.mxu0 0.0
        %828 = vmatpush1.msra.mxu0 0.0
        %829 = vmatprep.subr.mxu0 0.0
        %830 = vmatpush1.msra.mxu0 0.0
        %831 = vmatprep.subr.mxu0 0.0
        %832 = vmatpush1.msra.mxu0 0.0
        %833 = vmatprep.subr.mxu0 0.0
        %834 = vmatpush1.msra.mxu0 0.0
        %835 = vmatprep.subr.mxu0 0.0
        %836 = vmatpush1.msra.mxu0 0.0
        %837 = vmatprep.subr.mxu0 0.0
        %838 = vmatpush1.msra.mxu0 0.0
        %839 = vmatprep.subr.mxu0 0.0
        %840 = vmatpush1.msra.mxu0 0.0
        %841 = vmatprep.subr.mxu0 0.0
        %842 = vmatpush1.msra.mxu0 0.0
        %843 = vmatprep.subr.mxu0 0.0
        %844 = vmatpush1.msra.mxu0 0.0
        %845 = vmatprep.subr.mxu0 0.0
        %846 = vmatpush1.msra.mxu0 0.0
        %847 = vmatprep.subr.mxu0 0.0
        %848 = vmatpush1.msra.mxu0 0.0
        %849 = vmatprep.subr.mxu0 0.0
        %850 = vmatpush1.msra.mxu0 0.0
        %851 = vmatprep.mubr.f32.mxu0 0.0
        %852 = vmatmul.mubr.f32.gmra.mrb[0].mxu0 %v783
        %v853 = vpop.f32.mrb[0].mxu0
        %v854 = vadd.f32 0.0, %v853
        %v855 = vpop.f32.mrb[0].mxu0
        %856 = vmatprep.mubr.f32.mxu0 0.0
        %857 = vmatmul.mubr.f32.gmra.mrb[0].mxu0 %v784
        %v858 = vpop.f32.mrb[0].mxu0
        %v859 = vadd.f32 0.0, %v858
        %v860 = vpop.f32.mrb[0].mxu0
        %861 = vmatprep.mubr.f32.mxu0 0.0
        %862 = vmatmul.mubr.f32.gmra.mrb[0].mxu0 %v785
        %v863 = vpop.f32.mrb[0].mxu0
        %v864 = vadd.f32 0.0, %v863
        %v865 = vpop.f32.mrb[0].mxu0
        %866 = vmatprep.mubr.f32.mxu0 0.0
        %867 = vmatmul.mubr.f32.gmra.mrb[0].mxu0 %v786
        %v868 = vpop.f32.mrb[0].mxu0
        %v869 = vadd.f32 0.0, %v868
        %v870 = vpop.f32.mrb[0].mxu0
        %871 = vdwg.mxu0
        %872 = vst [vmem:[#allocation2] sm:$0xff] %v854
        %873 = vst [vmem:[#allocation2 + $0x8] sm:$0xff] %v859
        %874 = vst [vmem:[#allocation2 + $0x10] sm:$0xff] %v864
        %875 = vst [vmem:[#allocation2 + $0x18] sm:$0xff] %v869
        %v876 = vld [vmem:[#allocation2] sm:$0xf]
        %v878 = vrot.slane %v876, 4
        %880 = vst [vmem:[#allocation3 + $0x80] sm:$0xf0] %v878
        %v881 = vld [vmem:[#allocation2 + $0x4] sm:$0xf]
        %v883 = vrot.slane %v881, 4
        %885 = vst [vmem:[#allocation3 + $0x88] sm:$0xf0] %v883
        %v886 = vld [vmem:[#allocation2 + $0x8] sm:$0xf]
        %v888 = vrot.slane %v886, 4
        %890 = vst [vmem:[#allocation3 + $0x90] sm:$0xf0] %v888
        %v891 = vld [vmem:[#allocation2 + $0xc] sm:$0xf]
        %v893 = vrot.slane %v891, 4
        %895 = vst [vmem:[#allocation3 + $0x98] sm:$0xf0] %v893
        %v896 = vld [vmem:[#allocation2 + $0x10] sm:$0xf]
        %v898 = vrot.slane %v896, 4
        %900 = vst [vmem:[#allocation3 + $0xa0] sm:$0xf0] %v898
        %v901 = vld [vmem:[#allocation2 + $0x14] sm:$0xf]
        %v903 = vrot.slane %v901, 4
        %905 = vst [vmem:[#allocation3 + $0xa8] sm:$0xf0] %v903
        %v906 = vld [vmem:[#allocation2 + $0x18] sm:$0xf]
        %v908 = vrot.slane %v906, 4
        %910 = vst [vmem:[#allocation3 + $0xb0] sm:$0xf0] %v908
        %v911 = vld [vmem:[#allocation2 + $0x1c] sm:$0xf]
        %v913 = vrot.slane %v911, 4
        %915 = vst [vmem:[#allocation3 + $0xb8] sm:$0xf0] %v913
        %v916 = vld [vmem:[#allocation2] sm:$0xff]
        %v917 = vld [vmem:[#allocation2 + $0x8] sm:$0xff]
        %v918 = vld [vmem:[#allocation2 + $0x10] sm:$0xff]
        %v919 = vld [vmem:[#allocation2 + $0x18] sm:$0xff]
        %920 = vmatprep.subr.mxu0 0.0
        %921 = vmatpush1.msra.mxu0 %v767
        %922 = vmatprep.subr.mxu0 0.0
        %923 = vmatpush1.msra.mxu0 %v768
        %924 = vmatprep.subr.mxu0 0.0
        %925 = vmatpush1.msra.mxu0 %v769
        %926 = vmatprep.subr.mxu0 0.0
        %927 = vmatpush1.msra.mxu0 %v770
        %928 = vmatprep.subr.mxu0 0.0
        %929 = vmatpush1.msra.mxu0 %v771
        %930 = vmatprep.subr.mxu0 0.0
        %931 = vmatpush1.msra.mxu0 %v772
        %932 = vmatprep.subr.mxu0 0.0
        %933 = vmatpush1.msra.mxu0 %v773
        %934 = vmatprep.subr.mxu0 0.0
        %935 = vmatpush1.msra.mxu0 %v774
        %936 = vmatprep.subr.mxu0 0.0
        %937 = vmatpush1.msra.mxu0 %v775
        %938 = vmatprep.subr.mxu0 0.0
        %939 = vmatpush1.msra.mxu0 %v776
        %940 = vmatprep.subr.mxu0 0.0
        %941 = vmatpush1.msra.mxu0 %v777
        %942 = vmatprep.subr.mxu0 0.0
        %943 = vmatpush1.msra.mxu0 %v778
        %944 = vmatprep.subr.mxu0 0.0
        %945 = vmatpush1.msra.mxu0 %v779
        %946 = vmatprep.subr.mxu0 0.0
        %947 = vmatpush1.msra.mxu0 %v780
        %948 = vmatprep.subr.mxu0 0.0
        %949 = vmatpush1.msra.mxu0 %v781
        %950 = vmatprep.subr.mxu0 0.0
        %951 = vmatpush1.msra.mxu0 %v782
        %952 = vmatprep.subr.mxu0 0.0
        %953 = vmatpush1.msra.mxu0 0.0
        %954 = vmatprep.subr.mxu0 0.0
        %955 = vmatpush1.msra.mxu0 0.0
        %956 = vmatprep.subr.mxu0 0.0
        %957 = vmatpush1.msra.mxu0 0.0
        %958 = vmatprep.subr.mxu0 0.0
        %959 = vmatpush1.msra.mxu0 0.0
        %960 = vmatprep.subr.mxu0 0.0
        %961 = vmatpush1.msra.mxu0 0.0
        %962 = vmatprep.subr.mxu0 0.0
        %963 = vmatpush1.msra.mxu0 0.0
        %964 = vmatprep.subr.mxu0 0.0
        %965 = vmatpush1.msra.mxu0 0.0
        %966 = vmatprep.subr.mxu0 0.0
        %967 = vmatpush1.msra.mxu0 0.0
        %968 = vmatprep.subr.mxu0 0.0
        %969 = vmatpush1.msra.mxu0 0.0
        %970 = vmatprep.subr.mxu0 0.0
        %971 = vmatpush1.msra.mxu0 0.0
        %972 = vmatprep.subr.mxu0 0.0
        %973 = vmatpush1.msra.mxu0 0.0
        %974 = vmatprep.subr.mxu0 0.0
        %975 = vmatpush1.msra.mxu0 0.0
        %976 = vmatprep.subr.mxu0 0.0
        %977 = vmatpush1.msra.mxu0 0.0
        %978 = vmatprep.subr.mxu0 0.0
        %979 = vmatpush1.msra.mxu0 0.0
        %980 = vmatprep.subr.mxu0 0.0
        %981 = vmatpush1.msra.mxu0 0.0
        %982 = vmatprep.subr.mxu0 0.0
        %983 = vmatpush1.msra.mxu0 0.0
        %984 = vmatprep.mubr.f32.mxu0 0.0
        %985 = vmatmul.mubr.f32.gmra.mrb[0].mxu0 %v916
        %v986 = vpop.f32.mrb[0].mxu0
        %v987 = vadd.f32 0.0, %v986
        %v988 = vpop.f32.mrb[0].mxu0
        %989 = vmatprep.mubr.f32.mxu0 0.0
        %990 = vmatmul.mubr.f32.gmra.mrb[0].mxu0 %v917
        %v991 = vpop.f32.mrb[0].mxu0
        %v992 = vadd.f32 0.0, %v991
        %v993 = vpop.f32.mrb[0].mxu0
        %994 = vmatprep.mubr.f32.mxu0 0.0
        %995 = vmatmul.mubr.f32.gmra.mrb[0].mxu0 %v918
        %v996 = vpop.f32.mrb[0].mxu0
        %v997 = vadd.f32 0.0, %v996
        %v998 = vpop.f32.mrb[0].mxu0
        %999 = vmatprep.mubr.f32.mxu0 0.0
        %1000 = vmatmul.mubr.f32.gmra.mrb[0].mxu0 %v919
        %v1001 = vpop.f32.mrb[0].mxu0
        %v1002 = vadd.f32 0.0, %v1001
        %v1003 = vpop.f32.mrb[0].mxu0
        %1004 = vdwg.mxu0
        %1005 = vst [vmem:[#allocation2] sm:$0xff] %v987
        %1006 = vst [vmem:[#allocation2 + $0x8] sm:$0xff] %v992
        %1007 = vst [vmem:[#allocation2 + $0x10] sm:$0xff] %v997
        %1008 = vst [vmem:[#allocation2 + $0x18] sm:$0xff] %v1002
        %v1009 = vld [vmem:[#allocation2] sm:$0xf]
        %1010 = vst [vmem:[#allocation3 + $0xc0] sm:$0xf] %v1009
        %v1011 = vld [vmem:[#allocation2 + $0x4] sm:$0xf]
        %1012 = vst [vmem:[#allocation3 + $0xc8] sm:$0xf] %v1011
        %v1013 = vld [vmem:[#allocation2 + $0x8] sm:$0xf]
        %1014 = vst [vmem:[#allocation3 + $0xd0] sm:$0xf] %v1013
        %v1015 = vld [vmem:[#allocation2 + $0xc] sm:$0xf]
        %1016 = vst [vmem:[#allocation3 + $0xd8] sm:$0xf] %v1015
        %v1017 = vld [vmem:[#allocation2 + $0x10] sm:$0xf]
        %1018 = vst [vmem:[#allocation3 + $0xe0] sm:$0xf] %v1017
        %v1019 = vld [vmem:[#allocation2 + $0x14] sm:$0xf]
        %1020 = vst [vmem:[#allocation3 + $0xe8] sm:$0xf] %v1019
        %v1021 = vld [vmem:[#allocation2 + $0x18] sm:$0xf]
        %1022 = vst [vmem:[#allocation3 + $0xf0] sm:$0xf] %v1021
        %v1023 = vld [vmem:[#allocation2 + $0x1c] sm:$0xf]
        %1024 = vst [vmem:[#allocation3 + $0xf8] sm:$0xf] %v1023
        %v1025 = vld [vmem:[%s2] sm:$0xff]
        %v1026 = vld [vmem:[%s2 + $0x8] sm:$0xff]
        %v1027 = vld [vmem:[%s2 + $0x10] sm:$0xff]
        %v1028 = vld [vmem:[%s2 + $0x18] sm:$0xff]
        %v1029 = vld [vmem:[#allocation3] sm:$0xff]
        %v1030 = vld [vmem:[#allocation3 + $0x8] sm:$0xff]
        %v1031 = vld [vmem:[#allocation3 + $0x10] sm:$0xff]
        %v1032 = vld [vmem:[#allocation3 + $0x18] sm:$0xff]
        %v1033 = vld [vmem:[#allocation3 + $0x20] sm:$0xff]
        %v1034 = vld [vmem:[#allocation3 + $0x28] sm:$0xff]
        %v1035 = vld [vmem:[#allocation3 + $0x30] sm:$0xff]
        %v1036 = vld [vmem:[#allocation3 + $0x38] sm:$0xff]
        %v1037 = vld [vmem:[#allocation3 + $0x40] sm:$0xff]
        %v1038 = vld [vmem:[#allocation3 + $0x48] sm:$0xff]
        %v1039 = vld [vmem:[#allocation3 + $0x50] sm:$0xff]
        %v1040 = vld [vmem:[#allocation3 + $0x58] sm:$0xff]
        %v1041 = vld [vmem:[#allocation3 + $0x60] sm:$0xff]
        %v1042 = vld [vmem:[#allocation3 + $0x68] sm:$0xff]
        %v1043 = vld [vmem:[#allocation3 + $0x70] sm:$0xff]
        %v1044 = vld [vmem:[#allocation3 + $0x78] sm:$0xff]
        %v1045 = vld [vmem:[#allocation3 + $0x80] sm:$0xff]
        %v1046 = vld [vmem:[#allocation3 + $0x88] sm:$0xff]
        %v1047 = vld [vmem:[#allocation3 + $0x90] sm:$0xff]
        %v1048 = vld [vmem:[#allocation3 + $0x98] sm:$0xff]
        %v1049 = vld [vmem:[#allocation3 + $0xa0] sm:$0xff]
        %v1050 = vld [vmem:[#allocation3 + $0xa8] sm:$0xff]
        %v1051 = vld [vmem:[#allocation3 + $0xb0] sm:$0xff]
        %v1052 = vld [vmem:[#allocation3 + $0xb8] sm:$0xff]
        %v1053 = vld [vmem:[#allocation3 + $0xc0] sm:$0xf]
        %v1054 = vld [vmem:[#allocation3 + $0xc8] sm:$0xf]
        %v1055 = vld [vmem:[#allocation3 + $0xd0] sm:$0xf]
        %v1056 = vld [vmem:[#allocation3 + $0xd8] sm:$0xf]
        %v1057 = vld [vmem:[#allocation3 + $0xe0] sm:$0xf]
        %v1058 = vld [vmem:[#allocation3 + $0xe8] sm:$0xf]
        %v1059 = vld [vmem:[#allocation3 + $0xf0] sm:$0xf]
        %v1060 = vld [vmem:[#allocation3 + $0xf8] sm:$0xf]
        %v1061 = vld [vmem:[%s3] sm:$0xff]
        %v1062 = vld [vmem:[%s3 + $0x8] sm:$0xff]
        %v1063 = vld [vmem:[%s3 + $0x10] sm:$0xff]
        %v1064 = vld [vmem:[%s3 + $0x18] sm:$0xff]
        %1066 = vset.pattern.permute.xlu0 0
        %1067 = vperm.xlu0 %1066, %v1061
        %v1068 = vpop.permute.xlu0 %1067
        %1071 = vset.pattern.permute.xlu0 0
        %1072 = vperm.xlu0 %1071, %v1062
        %v1073 = vpop.permute.xlu0 %1072
        %1076 = vset.pattern.permute.xlu0 0
        %1077 = vperm.xlu0 %1076, %v1063
        %v1078 = vpop.permute.xlu0 %1077
        %1081 = vset.pattern.permute.xlu0 0
        %1082 = vperm.xlu0 %1081, %v1064
        %v1083 = vpop.permute.xlu0 %1082
        %vm1085 = vcmask 228352
        %v1087 = vsel %vm1085, %v1025, 0
        %v1090 = vsel %vm1085, %v1026, 0
        %v1093 = vsel %vm1085, %v1027, 0
        %v1096 = vsel %vm1085, %v1028, 0
        %vm1098 = vcmask 1043456
        %v1100 = vsel %vm1098, %v1053, 0
        %v1103 = vsel %vm1098, %v1054, 0
        %v1106 = vsel %vm1098, %v1055, 0
        %v1109 = vsel %vm1098, %v1056, 0
        %v1112 = vsel %vm1098, %v1057, 0
        %v1115 = vsel %vm1098, %v1058, 0
        %v1118 = vsel %vm1098, %v1059, 0
        %v1121 = vsel %vm1098, %v1060, 0
        %1123 = vmatprep.subr.mxu0 %v1030
        %1124 = vmatpush1.msra.mxu0 %v1029
        %1125 = vmatprep.subr.mxu0 %v1038
        %1126 = vmatpush1.msra.mxu0 %v1037
        %1127 = vmatprep.subr.mxu0 %v1046
        %1128 = vmatpush1.msra.mxu0 %v1045
        %1129 = vmatprep.subr.mxu0 %v1103
        %1130 = vmatpush1.msra.mxu0 %v1100
        %1131 = vmatprep.subr.mxu0 0.0
        %1132 = vmatpush1.msra.mxu0 0.0
        %1133 = vmatprep.subr.mxu0 0.0
        %1134 = vmatpush1.msra.mxu0 0.0
        %1135 = vmatprep.subr.mxu0 0.0
        %1136 = vmatpush1.msra.mxu0 0.0
        %1137 = vmatprep.subr.mxu0 0.0
        %1138 = vmatpush1.msra.mxu0 0.0
        %1139 = vmatprep.subr.mxu0 0.0
        %1140 = vmatpush1.msra.mxu0 0.0
        %1141 = vmatprep.subr.mxu0 0.0
        %1142 = vmatpush1.msra.mxu0 0.0
        %1143 = vmatprep.subr.mxu0 0.0
        %1144 = vmatpush1.msra.mxu0 0.0
        %1145 = vmatprep.subr.mxu0 0.0
        %1146 = vmatpush1.msra.mxu0 0.0
        %1147 = vmatprep.subr.mxu0 0.0
        %1148 = vmatpush1.msra.mxu0 0.0
        %1149 = vmatprep.subr.mxu0 0.0
        %1150 = vmatpush1.msra.mxu0 0.0
        %1151 = vmatprep.subr.mxu0 0.0
        %1152 = vmatpush1.msra.mxu0 0.0
        %1153 = vmatprep.subr.mxu0 0.0
        %1154 = vmatpush1.msra.mxu0 0.0
        %1155 = vmatprep.subr.mxu0 0.0
        %1156 = vmatpush1.msra.mxu0 0.0
        %1157 = vmatprep.subr.mxu0 0.0
        %1158 = vmatpush1.msra.mxu0 0.0
        %1159 = vmatprep.subr.mxu0 0.0
        %1160 = vmatpush1.msra.mxu0 0.0
        %1161 = vmatprep.subr.mxu0 0.0
        %1162 = vmatpush1.msra.mxu0 0.0
        %1163 = vmatprep.subr.mxu0 0.0
        %1164 = vmatpush1.msra.mxu0 0.0
        %1165 = vmatprep.subr.mxu0 0.0
        %1166 = vmatpush1.msra.mxu0 0.0
        %1167 = vmatprep.subr.mxu0 0.0
        %1168 = vmatpush1.msra.mxu0 0.0
        %1169 = vmatprep.subr.mxu0 0.0
        %1170 = vmatpush1.msra.mxu0 0.0
        %1171 = vmatprep.subr.mxu0 0.0
        %1172 = vmatpush1.msra.mxu0 0.0
        %1173 = vmatprep.subr.mxu0 0.0
        %1174 = vmatpush1.msra.mxu0 0.0
        %1175 = vmatprep.subr.mxu0 0.0
        %1176 = vmatpush1.msra.mxu0 0.0
        %1177 = vmatprep.subr.mxu0 0.0
        %1178 = vmatpush1.msra.mxu0 0.0
        %1179 = vmatprep.subr.mxu0 0.0
        %1180 = vmatpush1.msra.mxu0 0.0
        %1181 = vmatprep.subr.mxu0 0.0
        %1182 = vmatpush1.msra.mxu0 0.0
        %1183 = vmatprep.subr.mxu0 0.0
        %1184 = vmatpush1.msra.mxu0 0.0
        %1185 = vmatprep.subr.mxu0 0.0
        %1186 = vmatpush1.msra.mxu0 0.0
        %1187 = vmatprep.mubr.f32.mxu0 0.0
        %1188 = vmatmul.mubr.f32.gmra.mrb[0].mxu0 %v1087
        %v1189 = vpop.f32.mrb[0].mxu0
        %v1190 = vadd.f32 %v1068, %v1189
        %v1191 = vpop.f32.mrb[0].mxu0
        %v1192 = vadd.f32 %v1068, %v1191
        %1193 = vmatprep.mubr.f32.mxu0 0.0
        %1194 = vmatmul.mubr.f32.gmra.mrb[0].mxu0 %v1090
        %v1195 = vpop.f32.mrb[0].mxu0
        %v1196 = vadd.f32 %v1073, %v1195
        %v1197 = vpop.f32.mrb[0].mxu0
        %v1198 = vadd.f32 %v1073, %v1197
        %1199 = vmatprep.mubr.f32.mxu0 0.0
        %1200 = vmatmul.mubr.f32.gmra.mrb[0].mxu0 %v1093
        %v1201 = vpop.f32.mrb[0].mxu0
        %v1202 = vadd.f32 %v1078, %v1201
        %v1203 = vpop.f32.mrb[0].mxu0
        %v1204 = vadd.f32 %v1078, %v1203
        %1205 = vmatprep.mubr.f32.mxu0 0.0
        %1206 = vmatmul.mubr.f32.gmra.mrb[0].mxu0 %v1096
        %v1207 = vpop.f32.mrb[0].mxu0
        %v1208 = vadd.f32 %v1083, %v1207
        %v1209 = vpop.f32.mrb[0].mxu0
        %v1210 = vadd.f32 %v1083, %v1209
        %1211 = vdwg.mxu0
        %1212 = vmatprep.subr.mxu0 %v1032
        %1213 = vmatpush1.msra.mxu0 %v1031
        %1214 = vmatprep.subr.mxu0 %v1040
        %1215 = vmatpush1.msra.mxu0 %v1039
        %1216 = vmatprep.subr.mxu0 %v1048
        %1217 = vmatpush1.msra.mxu0 %v1047
        %1218 = vmatprep.subr.mxu0 %v1109
        %1219 = vmatpush1.msra.mxu0 %v1106
        %1220 = vmatprep.subr.mxu0 0.0
        %1221 = vmatpush1.msra.mxu0 0.0
        %1222 = vmatprep.subr.mxu0 0.0
        %1223 = vmatpush1.msra.mxu0 0.0
        %1224 = vmatprep.subr.mxu0 0.0
        %1225 = vmatpush1.msra.mxu0 0.0
        %1226 = vmatprep.subr.mxu0 0.0
        %1227 = vmatpush1.msra.mxu0 0.0
        %1228 = vmatprep.subr.mxu0 0.0
        %1229 = vmatpush1.msra.mxu0 0.0
        %1230 = vmatprep.subr.mxu0 0.0
        %1231 = vmatpush1.msra.mxu0 0.0
        %1232 = vmatprep.subr.mxu0 0.0
        %1233 = vmatpush1.msra.mxu0 0.0
        %1234 = vmatprep.subr.mxu0 0.0
        %1235 = vmatpush1.msra.mxu0 0.0
        %1236 = vmatprep.subr.mxu0 0.0
        %1237 = vmatpush1.msra.mxu0 0.0
        %1238 = vmatprep.subr.mxu0 0.0
        %1239 = vmatpush1.msra.mxu0 0.0
        %1240 = vmatprep.subr.mxu0 0.0
        %1241 = vmatpush1.msra.mxu0 0.0
        %1242 = vmatprep.subr.mxu0 0.0
        %1243 = vmatpush1.msra.mxu0 0.0
        %1244 = vmatprep.subr.mxu0 0.0
        %1245 = vmatpush1.msra.mxu0 0.0
        %1246 = vmatprep.subr.mxu0 0.0
        %1247 = vmatpush1.msra.mxu0 0.0
        %1248 = vmatprep.subr.mxu0 0.0
        %1249 = vmatpush1.msra.mxu0 0.0
        %1250 = vmatprep.subr.mxu0 0.0
        %1251 = vmatpush1.msra.mxu0 0.0
        %1252 = vmatprep.subr.mxu0 0.0
        %1253 = vmatpush1.msra.mxu0 0.0
        %1254 = vmatprep.subr.mxu0 0.0
        %1255 = vmatpush1.msra.mxu0 0.0
        %1256 = vmatprep.subr.mxu0 0.0
        %1257 = vmatpush1.msra.mxu0 0.0
        %1258 = vmatprep.subr.mxu0 0.0
        %1259 = vmatpush1.msra.mxu0 0.0
        %1260 = vmatprep.subr.mxu0 0.0
        %1261 = vmatpush1.msra.mxu0 0.0
        %1262 = vmatprep.subr.mxu0 0.0
        %1263 = vmatpush1.msra.mxu0 0.0
        %1264 = vmatprep.subr.mxu0 0.0
        %1265 = vmatpush1.msra.mxu0 0.0
        %1266 = vmatprep.subr.mxu0 0.0
        %1267 = vmatpush1.msra.mxu0 0.0
        %1268 = vmatprep.subr.mxu0 0.0
        %1269 = vmatpush1.msra.mxu0 0.0
        %1270 = vmatprep.subr.mxu0 0.0
        %1271 = vmatpush1.msra.mxu0 0.0
        %1272 = vmatprep.subr.mxu0 0.0
        %1273 = vmatpush1.msra.mxu0 0.0
        %1274 = vmatprep.subr.mxu0 0.0
        %1275 = vmatpush1.msra.mxu0 0.0
        %1276 = vmatprep.mubr.f32.mxu0 0.0
        %1277 = vmatmul.mubr.f32.gmra.mrb[0].mxu0 %v1087
        %v1278 = vpop.f32.mrb[0].mxu0
        %v1279 = vadd.f32 %v1068, %v1278
        %v1280 = vpop.f32.mrb[0].mxu0
        %v1281 = vadd.f32 %v1068, %v1280
        %1282 = vmatprep.mubr.f32.mxu0 0.0
        %1283 = vmatmul.mubr.f32.gmra.mrb[0].mxu0 %v1090
        %v1284 = vpop.f32.mrb[0].mxu0
        %v1285 = vadd.f32 %v1073, %v1284
        %v1286 = vpop.f32.mrb[0].mxu0
        %v1287 = vadd.f32 %v1073, %v1286
        %1288 = vmatprep.mubr.f32.mxu0 0.0
        %1289 = vmatmul.mubr.f32.gmra.mrb[0].mxu0 %v1093
        %v1290 = vpop.f32.mrb[0].mxu0
        %v1291 = vadd.f32 %v1078, %v1290
        %v1292 = vpop.f32.mrb[0].mxu0
        %v1293 = vadd.f32 %v1078, %v1292
        %1294 = vmatprep.mubr.f32.mxu0 0.0
        %1295 = vmatmul.mubr.f32.gmra.mrb[0].mxu0 %v1096
        %v1296 = vpop.f32.mrb[0].mxu0
        %v1297 = vadd.f32 %v1083, %v1296
        %v1298 = vpop.f32.mrb[0].mxu0
        %v1299 = vadd.f32 %v1083, %v1298
        %1300 = vdwg.mxu0
        %1301 = vmatprep.subr.mxu0 %v1034
        %1302 = vmatpush1.msra.mxu0 %v1033
        %1303 = vmatprep.subr.mxu0 %v1042
        %1304 = vmatpush1.msra.mxu0 %v1041
        %1305 = vmatprep.subr.mxu0 %v1050
        %1306 = vmatpush1.msra.mxu0 %v1049
        %1307 = vmatprep.subr.mxu0 %v1115
        %1308 = vmatpush1.msra.mxu0 %v1112
        %1309 = vmatprep.subr.mxu0 0.0
        %1310 = vmatpush1.msra.mxu0 0.0
        %1311 = vmatprep.subr.mxu0 0.0
        %1312 = vmatpush1.msra.mxu0 0.0
        %1313 = vmatprep.subr.mxu0 0.0
        %1314 = vmatpush1.msra.mxu0 0.0
        %1315 = vmatprep.subr.mxu0 0.0
        %1316 = vmatpush1.msra.mxu0 0.0
        %1317 = vmatprep.subr.mxu0 0.0
        %1318 = vmatpush1.msra.mxu0 0.0
        %1319 = vmatprep.subr.mxu0 0.0
        %1320 = vmatpush1.msra.mxu0 0.0
        %1321 = vmatprep.subr.mxu0 0.0
        %1322 = vmatpush1.msra.mxu0 0.0
        %1323 = vmatprep.subr.mxu0 0.0
        %1324 = vmatpush1.msra.mxu0 0.0
        %1325 = vmatprep.subr.mxu0 0.0
        %1326 = vmatpush1.msra.mxu0 0.0
        %1327 = vmatprep.subr.mxu0 0.0
        %1328 = vmatpush1.msra.mxu0 0.0
        %1329 = vmatprep.subr.mxu0 0.0
        %1330 = vmatpush1.msra.mxu0 0.0
        %1331 = vmatprep.subr.mxu0 0.0
        %1332 = vmatpush1.msra.mxu0 0.0
        %1333 = vmatprep.subr.mxu0 0.0
        %1334 = vmatpush1.msra.mxu0 0.0
        %1335 = vmatprep.subr.mxu0 0.0
        %1336 = vmatpush1.msra.mxu0 0.0
        %1337 = vmatprep.subr.mxu0 0.0
        %1338 = vmatpush1.msra.mxu0 0.0
        %1339 = vmatprep.subr.mxu0 0.0
        %1340 = vmatpush1.msra.mxu0 0.0
        %1341 = vmatprep.subr.mxu0 0.0
        %1342 = vmatpush1.msra.mxu0 0.0
        %1343 = vmatprep.subr.mxu0 0.0
        %1344 = vmatpush1.msra.mxu0 0.0
        %1345 = vmatprep.subr.mxu0 0.0
        %1346 = vmatpush1.msra.mxu0 0.0
        %1347 = vmatprep.subr.mxu0 0.0
        %1348 = vmatpush1.msra.mxu0 0.0
        %1349 = vmatprep.subr.mxu0 0.0
        %1350 = vmatpush1.msra.mxu0 0.0
        %1351 = vmatprep.subr.mxu0 0.0
        %1352 = vmatpush1.msra.mxu0 0.0
        %1353 = vmatprep.subr.mxu0 0.0
        %1354 = vmatpush1.msra.mxu0 0.0
        %1355 = vmatprep.subr.mxu0 0.0
        %1356 = vmatpush1.msra.mxu0 0.0
        %1357 = vmatprep.subr.mxu0 0.0
        %1358 = vmatpush1.msra.mxu0 0.0
        %1359 = vmatprep.subr.mxu0 0.0
        %1360 = vmatpush1.msra.mxu0 0.0
        %1361 = vmatprep.subr.mxu0 0.0
        %1362 = vmatpush1.msra.mxu0 0.0
        %1363 = vmatprep.subr.mxu0 0.0
        %1364 = vmatpush1.msra.mxu0 0.0
        %1365 = vmatprep.mubr.f32.mxu0 0.0
        %1366 = vmatmul.mubr.f32.gmra.mrb[0].mxu0 %v1087
        %v1367 = vpop.f32.mrb[0].mxu0
        %v1368 = vadd.f32 %v1068, %v1367
        %v1369 = vpop.f32.mrb[0].mxu0
        %v1370 = vadd.f32 %v1068, %v1369
        %1371 = vmatprep.mubr.f32.mxu0 0.0
        %1372 = vmatmul.mubr.f32.gmra.mrb[0].mxu0 %v1090
        %v1373 = vpop.f32.mrb[0].mxu0
        %v1374 = vadd.f32 %v1073, %v1373
        %v1375 = vpop.f32.mrb[0].mxu0
        %v1376 = vadd.f32 %v1073, %v1375
        %1377 = vmatprep.mubr.f32.mxu0 0.0
        %1378 = vmatmul.mubr.f32.gmra.mrb[0].mxu0 %v1093
        %v1379 = vpop.f32.mrb[0].mxu0
        %v1380 = vadd.f32 %v1078, %v1379
        %v1381 = vpop.f32.mrb[0].mxu0
        %v1382 = vadd.f32 %v1078, %v1381
        %1383 = vmatprep.mubr.f32.mxu0 0.0
        %1384 = vmatmul.mubr.f32.gmra.mrb[0].mxu0 %v1096
        %v1385 = vpop.f32.mrb[0].mxu0
        %v1386 = vadd.f32 %v1083, %v1385
        %v1387 = vpop.f32.mrb[0].mxu0
        %v1388 = vadd.f32 %v1083, %v1387
        %1389 = vdwg.mxu0
        %1390 = vmatprep.subr.mxu0 %v1036
        %1391 = vmatpush1.msra.mxu0 %v1035
        %1392 = vmatprep.subr.mxu0 %v1044
        %1393 = vmatpush1.msra.mxu0 %v1043
        %1394 = vmatprep.subr.mxu0 %v1052
        %1395 = vmatpush1.msra.mxu0 %v1051
        %1396 = vmatprep.subr.mxu0 %v1121
        %1397 = vmatpush1.msra.mxu0 %v1118
        %1398 = vmatprep.subr.mxu0 0.0
        %1399 = vmatpush1.msra.mxu0 0.0
        %1400 = vmatprep.subr.mxu0 0.0
        %1401 = vmatpush1.msra.mxu0 0.0
        %1402 = vmatprep.subr.mxu0 0.0
        %1403 = vmatpush1.msra.mxu0 0.0
        %1404 = vmatprep.subr.mxu0 0.0
        %1405 = vmatpush1.msra.mxu0 0.0
        %1406 = vmatprep.subr.mxu0 0.0
        %1407 = vmatpush1.msra.mxu0 0.0
        %1408 = vmatprep.subr.mxu0 0.0
        %1409 = vmatpush1.msra.mxu0 0.0
        %1410 = vmatprep.subr.mxu0 0.0
        %1411 = vmatpush1.msra.mxu0 0.0
        %1412 = vmatprep.subr.mxu0 0.0
        %1413 = vmatpush1.msra.mxu0 0.0
        %1414 = vmatprep.subr.mxu0 0.0
        %1415 = vmatpush1.msra.mxu0 0.0
        %1416 = vmatprep.subr.mxu0 0.0
        %1417 = vmatpush1.msra.mxu0 0.0
        %1418 = vmatprep.subr.mxu0 0.0
        %1419 = vmatpush1.msra.mxu0 0.0
        %1420 = vmatprep.subr.mxu0 0.0
        %1421 = vmatpush1.msra.mxu0 0.0
        %1422 = vmatprep.subr.mxu0 0.0
        %1423 = vmatpush1.msra.mxu0 0.0
        %1424 = vmatprep.subr.mxu0 0.0
        %1425 = vmatpush1.msra.mxu0 0.0
        %1426 = vmatprep.subr.mxu0 0.0
        %1427 = vmatpush1.msra.mxu0 0.0
        %1428 = vmatprep.subr.mxu0 0.0
        %1429 = vmatpush1.msra.mxu0 0.0
        %1430 = vmatprep.subr.mxu0 0.0
        %1431 = vmatpush1.msra.mxu0 0.0
        %1432 = vmatprep.subr.mxu0 0.0
        %1433 = vmatpush1.msra.mxu0 0.0
        %1434 = vmatprep.subr.mxu0 0.0
        %1435 = vmatpush1.msra.mxu0 0.0
        %1436 = vmatprep.subr.mxu0 0.0
        %1437 = vmatpush1.msra.mxu0 0.0
        %1438 = vmatprep.subr.mxu0 0.0
        %1439 = vmatpush1.msra.mxu0 0.0
        %1440 = vmatprep.subr.mxu0 0.0
        %1441 = vmatpush1.msra.mxu0 0.0
        %1442 = vmatprep.subr.mxu0 0.0
        %1443 = vmatpush1.msra.mxu0 0.0
        %1444 = vmatprep.subr.mxu0 0.0
        %1445 = vmatpush1.msra.mxu0 0.0
        %1446 = vmatprep.subr.mxu0 0.0
        %1447 = vmatpush1.msra.mxu0 0.0
        %1448 = vmatprep.subr.mxu0 0.0
        %1449 = vmatpush1.msra.mxu0 0.0
        %1450 = vmatprep.subr.mxu0 0.0
        %1451 = vmatpush1.msra.mxu0 0.0
        %1452 = vmatprep.subr.mxu0 0.0
        %1453 = vmatpush1.msra.mxu0 0.0
        %1454 = vmatprep.mubr.f32.mxu0 0.0
        %1455 = vmatmul.mubr.f32.gmra.mrb[0].mxu0 %v1087
        %v1456 = vpop.f32.mrb[0].mxu0
        %v1457 = vadd.f32 %v1068, %v1456
        %v1458 = vpop.f32.mrb[0].mxu0
        %v1459 = vadd.f32 %v1068, %v1458
        %1460 = vmatprep.mubr.f32.mxu0 0.0
        %1461 = vmatmul.mubr.f32.gmra.mrb[0].mxu0 %v1090
        %v1462 = vpop.f32.mrb[0].mxu0
        %v1463 = vadd.f32 %v1073, %v1462
        %v1464 = vpop.f32.mrb[0].mxu0
        %v1465 = vadd.f32 %v1073, %v1464
        %1466 = vmatprep.mubr.f32.mxu0 0.0
        %1467 = vmatmul.mubr.f32.gmra.mrb[0].mxu0 %v1093
        %v1468 = vpop.f32.mrb[0].mxu0
        %v1469 = vadd.f32 %v1078, %v1468
        %v1470 = vpop.f32.mrb[0].mxu0
        %v1471 = vadd.f32 %v1078, %v1470
        %1472 = vmatprep.mubr.f32.mxu0 0.0
        %1473 = vmatmul.mubr.f32.gmra.mrb[0].mxu0 %v1096
        %v1474 = vpop.f32.mrb[0].mxu0
        %v1475 = vadd.f32 %v1083, %v1474
        %v1476 = vpop.f32.mrb[0].mxu0
        %v1477 = vadd.f32 %v1083, %v1476
        %1478 = vdwg.mxu0
        %1479 = vst [vmem:[%s230] sm:$0xff] %v1190
        %1480 = vst [vmem:[%s230 + $0x8] sm:$0xff] %v1192
        %1481 = vst [vmem:[%s230 + $0x10] sm:$0xff] %v1279
        %1482 = vst [vmem:[%s230 + $0x18] sm:$0xff] %v1281
        %1483 = vst [vmem:[%s230 + $0x20] sm:$0xff] %v1368
        %1484 = vst [vmem:[%s230 + $0x28] sm:$0xff] %v1370
        %1485 = vst [vmem:[%s230 + $0x30] sm:$0xff] %v1457
        %1486 = vst [vmem:[%s230 + $0x38] sm:$0xff] %v1459
        %1487 = vst [vmem:[%s230 + $0x40] sm:$0xff] %v1196
        %1488 = vst [vmem:[%s230 + $0x48] sm:$0xff] %v1198
        %1489 = vst [vmem:[%s230 + $0x50] sm:$0xff] %v1285
        %1490 = vst [vmem:[%s230 + $0x58] sm:$0xff] %v1287
        %1491 = vst [vmem:[%s230 + $0x60] sm:$0xff] %v1374
        %1492 = vst [vmem:[%s230 + $0x68] sm:$0xff] %v1376
        %1493 = vst [vmem:[%s230 + $0x70] sm:$0xff] %v1463
        %1494 = vst [vmem:[%s230 + $0x78] sm:$0xff] %v1465
        %1495 = vst [vmem:[%s230 + $0x80] sm:$0xff] %v1202
        %1496 = vst [vmem:[%s230 + $0x88] sm:$0xff] %v1204
        %1497 = vst [vmem:[%s230 + $0x90] sm:$0xff] %v1291
        %1498 = vst [vmem:[%s230 + $0x98] sm:$0xff] %v1293
        %1499 = vst [vmem:[%s230 + $0xa0] sm:$0xff] %v1380
        %1500 = vst [vmem:[%s230 + $0xa8] sm:$0xff] %v1382
        %1501 = vst [vmem:[%s230 + $0xb0] sm:$0xff] %v1469
        %1502 = vst [vmem:[%s230 + $0xb8] sm:$0xff] %v1471
        %1503 = vst [vmem:[%s230 + $0xc0] sm:$0xff] %v1208
        %1504 = vst [vmem:[%s230 + $0xc8] sm:$0xff] %v1210
        %1505 = vst [vmem:[%s230 + $0xd0] sm:$0xff] %v1297
        %1506 = vst [vmem:[%s230 + $0xd8] sm:$0xff] %v1299
        %1507 = vst [vmem:[%s230 + $0xe0] sm:$0xff] %v1386
        %1508 = vst [vmem:[%s230 + $0xe8] sm:$0xff] %v1388
        %1509 = vst [vmem:[%s230 + $0xf0] sm:$0xff] %v1475
        %1510 = vst [vmem:[%s230 + $0xf8] sm:$0xff] %v1477
        %s1511 = sand.u32 %s119, 1
        %s1512 = scalar_lea.sflag [#allocation6], %s1511
        %s1513 = sand.u32 %s119, 1
        %s1514 = smul.addr %s1513, 256
        %s1515 = scalar_lea.vmem [#allocation9], %s1514
        // Predicated region
        $region45: #{tpu_custom_call.1} parent=35 // pred_check
          %p1516 = pneg %p129
        $region46: #{tpu_custom_call.1} parent=35 // pred_check_branch
          %1518 = sbr.rel (%p1516) target = $region48
        $region47: #{tpu_custom_call.1} parent=35 // pred_region
          %s1519 = smul.u32 8, %s22
          %s1521 = ssub.s32 4096, 4096
          %1522 = vsyncadd %s1512, %s1521
          %s1523 = smul.addr %s1519, 128
          %s1524 = scalar_lea.hbm %s4, %s1523
          %s1525 = sshll.u32 %s1515, 4
          %s1526 = int_to_ptr.vmem [resolvable:$true] %s1525
          %1531 = dma.vmem_to_hbm [thread:$0]  %s1526, 4096, %s1524, %s1512, 1024, 2048, 64
        $region48: #{tpu_custom_call.1} parent=35 // pred_fallthru
          _
      $region36: #{tpu_custom_call.1} parent=5 // pred_fallthru
        _
      %p1532 = scmp.le.s32.totalorder 2, %s17
      // Predicated region
      $region49: #{tpu_custom_call.1} parent=5 // pred_check
        %p1533 = pneg %p1532
      $region50: #{tpu_custom_call.1} parent=5 // pred_check_branch
        %1535 = sbr.rel (%p1533) target = $region52
      $region51: #{tpu_custom_call.1} parent=5 // pred_region
        %s1536 = ssub.s32 %s17, 2
        // Predicated region
        $region53: #{tpu_custom_call.1} parent=51 // pred_check
          %p1537 = pneg %p135
        $region54: #{tpu_custom_call.1} parent=51 // pred_check_branch
          %1539 = sbr.rel (%p1537) target = $region56
        $region55: #{tpu_custom_call.1} parent=51 // pred_region
          %s1540 = sand.u32 %s120, 1
          %s1541 = scalar_lea.sflag [#allocation6], %s1540
          %s1542 = sand.u32 %s120, 1
          %s1543 = smul.addr %s1542, 256
          %s1544 = scalar_lea.vmem [#allocation9], %s1543
          %1545 = dma.done %s1541, 4096
        $region56: #{tpu_custom_call.1} parent=51 // pred_fallthru
          _
      $region52: #{tpu_custom_call.1} parent=5 // pred_fallthru
        _
    $region6: #{tpu_custom_call.1} parent=1 // loop_footer
      %s21 = sadd.s32 1, %s17
    $region7: #{tpu_custom_call.1} parent=1 // loop_footer_branch
      %16 = sbr.rel target = $region3
    $region8: #{tpu_custom_call.1} parent=1 // loop_exit
      _
    %1546 = vsyncpa [#allocation5], 1
    %s1547 = scalar_lea.sflag [#allocation5], 1
    %1548 = vsyncpa %s1547, 1
    %1549 = vsyncpa [#allocation8], 1
    %1550 = vsyncpa [#allocation6], 1
    %s1551 = scalar_lea.sflag [#allocation6], 1
    %1552 = vsyncpa %s1551, 1

</llo_original>
